<compile_context>
chip_gen: v7x
topology: tpu7x:2x2x1
jax: 0.10.0
libtpu: 0.0.40
codegen_flags: <defaults>
</compile_context>

<pallas_src>
import jax
import jax.numpy as jnp
from jax.experimental import pallas as pl
from jax.experimental.pallas import tpu as pltpu

FEATURE_DIM = 128
FUSION_DIM = 128
NUM_CLASSES = 5
NUM_CLASSES_PAD = 8    # output slab width (= full last dim of the output array)
NUM_HEADS = 4
HEAD_DIM = FEATURE_DIM // NUM_HEADS
HEADS_PAD = 8          # pad head axis to 8 lanes (extra columns are exact zeros)


def _round_up(x, m):
    return (x + m - 1) // m * m


def kuralnet_kernel(
    x_ref,                  # [Bt, in_pad] f32: [whisper | trad | zero-pad] lanes
    w_proc, b_proc,         # block-diag processor Linear  (bf16 W, f32 b)
    w_qkv, b_qkv,           # block-diag fused Q|K|V for both tokens [256,768]
    h_blk,                  # packed score indicator [512, 64] (bf16, 0/1)
    e_blk,                  # packed expansion matrix [32, 512] (bf16, 0/1)
    w_of, b_of,             # folded (output-proj @ fusion-proj) Linear
    w_cl, b_cl,             # classifier, zero-padded to 8 output lanes
    out_ref,                # [Bt, 8] f32
):
    f32 = jnp.float32
    bf16 = jnp.bfloat16
    F = FEATURE_DIM

    # ---- Both feature processors in one block-diagonal matmul + ReLU --------
    # result lanes 0:128 = out_w, 128:256 = out_t
    out2 = jnp.maximum(
        jnp.dot(x_ref[...].astype(bf16), w_proc[...], preferred_element_type=f32)
        + b_proc[...], 0.0)                                        # [Bt, 256]

    # ---- Block-diagonal fused Q/K/V for both tokens (K=256) -----------------
    qkv = jnp.dot(out2.astype(bf16), w_qkv[...],
                  preferred_element_type=f32) + b_qkv[...]         # [Bt, 768]
    q0, k0, v0 = qkv[:, 0:F], qkv[:, F:2 * F], qkv[:, 2 * F:3 * F]
    q1, k1, v1 = qkv[:, 3 * F:4 * F], qkv[:, 4 * F:5 * F], qkv[:, 5 * F:6 * F]

    # ---- Packed per-head scores via ONE indicator matmul --------------------
    # qk lanes: [q0*k0 | q0*k1 | q1*k0 | q1*k1]  (all 128-lane aligned)
    qk = jnp.concatenate([q0 * k0, q0 * k1, q1 * k0, q1 * k1],
                         axis=1).astype(bf16)                      # [Bt, 512]
    # s_all cols 0:32 = [s00|s01|s10|s11], cols 32:64 = [s01|s00|s11|s10]
    s_all = jnp.dot(qk, h_blk[...], preferred_element_type=f32)    # [Bt, 64]

    # 2-way softmax as a single sigmoid on the packed slab:
    #   attn = sigmoid(s_self - s_other) = 1 / (1 + exp(s_other - s_self))
    # packed as [a00 | a01 | a10 | a11] in [Bt, 32].
    diff = jnp.minimum(s_all[:, 32:] - s_all[:, :32], 60.0)
    attn = pl.reciprocal(1.0 + jnp.exp(diff), approx=True)         # [Bt, 32]

    # ---- Packed expansion back onto lanes + attend ---------------------------
    w_lanes = jnp.dot(attn.astype(bf16), e_blk[...],
                      preferred_element_type=f32)                  # [Bt, 512]
    v_cat = jnp.concatenate([v0, v1, v0, v1], axis=1)              # [Bt, 512]
    ctx = w_lanes * v_cat
    # att0 = blk0 + blk1, att1 = blk2 + blk3; mean pool folds to 0.5 * sum.
    tok = 0.5 * (ctx[:, 0:F] + ctx[:, F:2 * F]
                 + ctx[:, 2 * F:3 * F] + ctx[:, 3 * F:4 * F])      # [Bt, 128]

    # ---- Folded (out-proj ∘ fusion) Linear + ReLU ----------------------------
    fused = jnp.maximum(
        jnp.dot(tok.astype(bf16), w_of[...], preferred_element_type=f32)
        + b_of[...], 0.0)                                          # [Bt, 128]

    # ---- Classifier (8-wide slab; full-array last dim store) ----------------
    out_ref[...] = (jnp.dot(fused.astype(bf16), w_cl[...],
                            preferred_element_type=f32) + b_cl[...])


def prepare_params(params, whisper_in, trad_in):
    """Fold / concatenate / pad PyTorch-style params into kernel params."""
    (w_wp, b_wp, w_tp, b_tp,
     wq, bq, wk, bk, wv, bv, wo, bo,
     w_fu, b_fu, w_cl, b_cl) = params

    bf16 = jnp.bfloat16
    F = FEATURE_DIM
    scale = 1.0 / (HEAD_DIM ** 0.5)
    in_pad = _round_up(whisper_in + trad_in, 128)

    # Block-diagonal processor weight on the lane-concat input.
    w_proc = jnp.zeros((in_pad, 2 * F), jnp.float32)
    w_proc = w_proc.at[:whisper_in, :F].set(w_wp)
    w_proc = w_proc.at[whisper_in:whisper_in + trad_in, F:].set(w_tp)
    b_proc = jnp.concatenate([b_wp, b_tp], axis=1)                  # [1, 256]

    # Fused Q|K|V (softmax scale folded into Q), duplicated block-diagonally.
    w_qkv = jnp.concatenate([wq * scale, wk, wv], axis=1)           # [128, 384]
    b_qkv = jnp.concatenate([bq * scale, bk, bv], axis=1)           # [1, 384]
    w_qkv2 = jnp.zeros((2 * F, 6 * F), jnp.float32)
    w_qkv2 = w_qkv2.at[:F, :3 * F].set(w_qkv)
    w_qkv2 = w_qkv2.at[F:, 3 * F:].set(w_qkv)
    b_qkv2 = jnp.concatenate([b_qkv, b_qkv], axis=1)                # [1, 768]

    # Head-indicator [128, 8]; 0/1 so exact in bf16 (heads 4..7 are zero pads).
    lane_head = jnp.arange(F) // HEAD_DIM
    h_ind = (lane_head[:, None] == jnp.arange(HEADS_PAD)[None, :]).astype(jnp.float32)

    # Packed score indicator [512, 64]:
    #   cols  0:32 -> [s00|s01|s10|s11],  cols 32:64 -> [s01|s00|s11|s10]
    h_blk = jnp.zeros((4 * F, 8 * HEADS_PAD), jnp.float32)
    for r in range(4):                       # r: product index q{r//2} * k{r%2}
        h_blk = h_blk.at[r * F:(r + 1) * F,
                         r * HEADS_PAD:(r + 1) * HEADS_PAD].set(h_ind)
        sw = r ^ 1                           # token-swapped slot
        base = 4 * HEADS_PAD + sw * HEADS_PAD
        h_blk = h_blk.at[r * F:(r + 1) * F, base:base + HEADS_PAD].set(h_ind)

    # Packed expansion matrix [32, 512]: block-diagonal h_ind^T.
    e_blk = jnp.zeros((4 * HEADS_PAD, 4 * F), jnp.float32)
    for r in range(4):
        e_blk = e_blk.at[r * HEADS_PAD:(r + 1) * HEADS_PAD,
                         r * F:(r + 1) * F].set(h_ind.T)

    # Exact fold: mean-pool and wo are linear with no nonlinearity before w_fu.
    w_of = jnp.dot(wo, w_fu)                                        # [128, 128]
    b_of = jnp.dot(bo, w_fu) + b_fu                                 # [1, 128]

    # Classifier zero-padded to the 8-wide output slab.
    w_cl_pad = jnp.zeros((FUSION_DIM, NUM_CLASSES_PAD),
                         jnp.float32).at[:, :NUM_CLASSES].set(w_cl)
    b_cl_pad = jnp.zeros((1, NUM_CLASSES_PAD),
                         jnp.float32).at[:, :NUM_CLASSES].set(b_cl)

    fused_params = (
        w_proc.astype(bf16), b_proc,
        w_qkv2.astype(bf16), b_qkv2,
        h_blk.astype(bf16), e_blk.astype(bf16),
        w_of.astype(bf16), b_of,
        w_cl_pad.astype(bf16), b_cl_pad,
    )
    return fused_params, in_pad


def kuralnet_forward(whisper_feats, trad_feats, fused_params, in_pad, *,
                     block_b=1024):
    B, wi = whisper_feats.shape
    ti = trad_feats.shape[1]

    # Lane-concat the two feature streams, zero-pad lanes to in_pad.
    x = jnp.concatenate([whisper_feats, trad_feats], axis=1)
    if x.shape[1] != in_pad:
        x = jnp.pad(x, ((0, 0), (0, in_pad - x.shape[1])))

    # Batch tile: multiple of 8; at least 2 grid steps when B allows it so
    # dimension_semantics=("parallel",) can use both v7x TensorCores.
    bb = _round_up(max(min(block_b, (B + 1) // 2), 8), 8)
    pb = _round_up(B, bb)
    if pb != B:
        x = jnp.pad(x, ((0, pb - B), (0, 0)))

    def full_spec(arr):
        nd = arr.ndim
        return pl.BlockSpec(arr.shape, lambda i, _nd=nd: (0,) * _nd)

    in_specs = [pl.BlockSpec((bb, in_pad), lambda i: (i, 0))]
    in_specs += [full_spec(p) for p in fused_params]
    out_specs = pl.BlockSpec((bb, NUM_CLASSES_PAD), lambda i: (i, 0))

    per_row_flops = 2 * (
        in_pad * 2 * FEATURE_DIM           # block-diag processors
        + 2 * FEATURE_DIM * 6 * FEATURE_DIM  # block-diag QKV
        + 4 * FEATURE_DIM * 8 * HEADS_PAD  # packed score indicator matmul
        + 4 * HEADS_PAD * 4 * FEATURE_DIM  # packed expansion matmul
        + FEATURE_DIM * FUSION_DIM         # folded out-proj/fusion
        + FUSION_DIM * NUM_CLASSES_PAD     # classifier
    )
    flops = per_row_flops * pb
    transcendentals = 2 * 4 * HEADS_PAD * pb      # exp + reciprocal per row
    bytes_accessed = (
        x.size * x.dtype.itemsize
        + sum(int(p.size) * p.dtype.itemsize for p in fused_params)
        + pb * NUM_CLASSES_PAD * 4
    )

    out = pl.pallas_call(
        kuralnet_kernel,
        out_shape=jax.ShapeDtypeStruct((pb, NUM_CLASSES_PAD), jnp.float32),
        grid=(pb // bb,),
        in_specs=in_specs,
        out_specs=out_specs,
        compiler_params=pltpu.CompilerParams(
            dimension_semantics=("parallel",)),
        cost_estimate=pl.CostEstimate(
            flops=int(flops),
            transcendentals=int(transcendentals),
            bytes_accessed=int(bytes_accessed)),
    )(x, *fused_params)

    return out[:B, :NUM_CLASSES]


def init_params(key, whisper_in, trad_in):
    """Deterministic synthetic parameters (PyTorch Linear weights stored transposed: [in, out])."""
    def lin(key, d_in, d_out):
        kw, kb = jax.random.split(key)
        bound = 1.0 / (d_in ** 0.5)
        w = jax.random.uniform(kw, (d_in, d_out), jnp.float32, -bound, bound)
        b = jax.random.uniform(kb, (1, d_out), jnp.float32, -bound, bound)
        return w, b

    keys = jax.random.split(key, 9)
    w_wp, b_wp = lin(keys[0], whisper_in, FEATURE_DIM)
    w_tp, b_tp = lin(keys[1], trad_in, FEATURE_DIM)
    wq, bq = lin(keys[2], FEATURE_DIM, FEATURE_DIM)
    wk, bk = lin(keys[3], FEATURE_DIM, FEATURE_DIM)
    wv, bv = lin(keys[4], FEATURE_DIM, FEATURE_DIM)
    wo, bo = lin(keys[5], FEATURE_DIM, FEATURE_DIM)
    w_fu, b_fu = lin(keys[6], FEATURE_DIM, FUSION_DIM)
    w_cl, b_cl = lin(keys[7], FUSION_DIM, NUM_CLASSES)
    return (w_wp, b_wp, w_tp, b_tp,
            wq, bq, wk, bk, wv, bv, wo, bo,
            w_fu, b_fu, w_cl, b_cl)


def reference_forward(wf, tf, params):
    """Pure-JAX f32 reference of the reconstructed KuralNet forward."""
    (w_wp, b_wp, w_tp, b_tp,
     wq, bq, wk, bk, wv, bv, wo, bo,
     w_fu, b_fu, w_cl, b_cl) = params
    B = wf.shape[0]
    out_w = jax.nn.relu(wf @ w_wp + b_wp)
    out_t = jax.nn.relu(tf @ w_tp + b_tp)
    toks = jnp.stack([out_w, out_t], axis=1)                        # [B, 2, 128]
    q = (toks @ wq + bq).reshape(B, 2, NUM_HEADS, HEAD_DIM)
    k = (toks @ wk + bk).reshape(B, 2, NUM_HEADS, HEAD_DIM)
    v = (toks @ wv + bv).reshape(B, 2, NUM_HEADS, HEAD_DIM)
    scores = jnp.einsum('bqhd,bkhd->bhqk', q, k) / (HEAD_DIM ** 0.5)
    att = jax.nn.softmax(scores, axis=-1)
    o = jnp.einsum('bhqk,bkhd->bqhd', att, v).reshape(B, 2, FEATURE_DIM)
    o = o @ wo + bo
    pooled = o.mean(axis=1)
    fused = jax.nn.relu(pooled @ w_fu + b_fu)
    return fused @ w_cl + b_cl


if __name__ == "__main__":
    B = 8            # batch
    WHISPER_IN = 64  # small whisper-embedding input dim
    TRAD_IN = 32     # small traditional-feature input dim

    key = jax.random.PRNGKey(0)
    k_w, k_t, k_p = jax.random.split(key, 3)
    whisper_feats = jax.random.normal(k_w, (B, WHISPER_IN), jnp.float32)
    trad_feats = jax.random.normal(k_t, (B, TRAD_IN), jnp.float32)

    params = init_params(k_p, WHISPER_IN, TRAD_IN)
    fused_params, in_pad = prepare_params(params, WHISPER_IN, TRAD_IN)

    logits = kuralnet_forward(whisper_feats, trad_feats, fused_params, in_pad)
    jax.block_until_ready(logits)

    assert logits.shape == (B, NUM_CLASSES) and logits.dtype == jnp.float32
    ref = reference_forward(whisper_feats, trad_feats, params)
    max_err = float(jnp.max(jnp.abs(logits - ref)))
    assert max_err < 0.3, f"kernel/reference mismatch: max abs err {max_err}"
    print("KERNEL_OK")
</pallas_src>

<mosaic_0001>
module attributes {stable_mosaic.version = 11 : i64} {
  func.func @kuralnet_kernel(%arg0: i32, %arg1: memref<8x128xf32, #tpu.memory_space<vmem>>, %arg2: memref<128x256xbf16, #tpu.memory_space<vmem>>, %arg3: memref<1x256xf32, #tpu.memory_space<vmem>>, %arg4: memref<256x768xbf16, #tpu.memory_space<vmem>>, %arg5: memref<1x768xf32, #tpu.memory_space<vmem>>, %arg6: memref<512x64xbf16, #tpu.memory_space<vmem>>, %arg7: memref<32x512xbf16, #tpu.memory_space<vmem>>, %arg8: memref<128x128xbf16, #tpu.memory_space<vmem>>, %arg9: memref<1x128xf32, #tpu.memory_space<vmem>>, %arg10: memref<128x8xbf16, #tpu.memory_space<vmem>>, %arg11: memref<1x8xf32, #tpu.memory_space<vmem>>, %arg12: memref<8x8xf32, #tpu.memory_space<vmem>>) attributes {dimension_semantics = [#tpu.dimension_semantics<parallel>], iteration_bounds = array<i64: 1>, scalar_prefetch = 0 : i64, scratch_operands = 0 : i64, tpu.core_type = #tpu.core_type<tc>, window_params = [{transform_indices = @transform_0, window_bounds = array<i64: 8, 128>}, {pipeline_mode = #tpu.pipeline_mode<synchronous>, transform_indices = @transform_1, window_bounds = array<i64: 128, 256>}, {pipeline_mode = #tpu.pipeline_mode<synchronous>, transform_indices = @transform_2, window_bounds = array<i64: 1, 256>}, {pipeline_mode = #tpu.pipeline_mode<synchronous>, transform_indices = @transform_3, window_bounds = array<i64: 256, 768>}, {pipeline_mode = #tpu.pipeline_mode<synchronous>, transform_indices = @transform_4, window_bounds = array<i64: 1, 768>}, {pipeline_mode = #tpu.pipeline_mode<synchronous>, transform_indices = @transform_5, window_bounds = array<i64: 512, 64>}, {pipeline_mode = #tpu.pipeline_mode<synchronous>, transform_indices = @transform_6, window_bounds = array<i64: 32, 512>}, {pipeline_mode = #tpu.pipeline_mode<synchronous>, transform_indices = @transform_7, window_bounds = array<i64: 128, 128>}, {pipeline_mode = #tpu.pipeline_mode<synchronous>, transform_indices = @transform_8, window_bounds = array<i64: 1, 128>}, {pipeline_mode = #tpu.pipeline_mode<synchronous>, transform_indices = @transform_9, window_bounds = array<i64: 128, 8>}, {pipeline_mode = #tpu.pipeline_mode<synchronous>, transform_indices = @transform_10, window_bounds = array<i64: 1, 8>}, {transform_indices = @transform_11, window_bounds = array<i64: 8, 8>}]} {
    %c0 = arith.constant 0 : index
    %c0_0 = arith.constant 0 : index
    %0 = vector.load %arg1[%c0, %c0_0] : memref<8x128xf32, #tpu.memory_space<vmem>>, vector<8x128xf32>
    %1 = arith.truncf %0 : vector<8x128xf32> to vector<8x128xbf16>
    %c0_1 = arith.constant 0 : index
    %c0_2 = arith.constant 0 : index
    %2 = vector.load %arg2[%c0_1, %c0_2] : memref<128x256xbf16, #tpu.memory_space<vmem>>, vector<128x256xbf16>
    %cst = arith.constant dense<0.000000e+00> : vector<8x256xf32>
    %3 = tpu.matmul %1, %2, %cst {dimension_numbers = #tpu.dot_dimension_numbers<[1], [0], [0], [1], [0, 0, 1, 1], [], []>} : vector<8x128xbf16>, vector<128x256xbf16>, vector<8x256xf32> -> vector<8x256xf32>
    %c0_3 = arith.constant 0 : index
    %c0_4 = arith.constant 0 : index
    %4 = vector.load %arg3[%c0_3, %c0_4] : memref<1x256xf32, #tpu.memory_space<vmem>>, vector<1x256xf32>
    %5 = vector.broadcast %4 : vector<1x256xf32> to vector<8x256xf32>
    %6 = arith.addf %3, %5 : vector<8x256xf32>
    %cst_5 = arith.constant 0.000000e+00 : f32
    %7 = vector.broadcast %cst_5 : f32 to vector<8x256xf32>
    %8 = arith.maximumf %6, %7 : vector<8x256xf32>
    %9 = arith.truncf %8 : vector<8x256xf32> to vector<8x256xbf16>
    %c0_6 = arith.constant 0 : index
    %c0_7 = arith.constant 0 : index
    %10 = vector.load %arg4[%c0_6, %c0_7] : memref<256x768xbf16, #tpu.memory_space<vmem>>, vector<256x768xbf16>
    %cst_8 = arith.constant dense<0.000000e+00> : vector<8x768xf32>
    %11 = tpu.matmul %9, %10, %cst_8 {dimension_numbers = #tpu.dot_dimension_numbers<[1], [0], [0], [1], [0, 0, 1, 1], [], []>} : vector<8x256xbf16>, vector<256x768xbf16>, vector<8x768xf32> -> vector<8x768xf32>
    %c0_9 = arith.constant 0 : index
    %c0_10 = arith.constant 0 : index
    %12 = vector.load %arg5[%c0_9, %c0_10] : memref<1x768xf32, #tpu.memory_space<vmem>>, vector<1x768xf32>
    %13 = vector.broadcast %12 : vector<1x768xf32> to vector<8x768xf32>
    %14 = arith.addf %11, %13 : vector<8x768xf32>
    %15 = vector.extract_strided_slice %14 {offsets = [0, 0], sizes = [8, 128], strides = [1, 1]} : vector<8x768xf32> to vector<8x128xf32>
    %16 = vector.extract_strided_slice %14 {offsets = [0, 128], sizes = [8, 128], strides = [1, 1]} : vector<8x768xf32> to vector<8x128xf32>
    %17 = vector.extract_strided_slice %14 {offsets = [0, 256], sizes = [8, 128], strides = [1, 1]} : vector<8x768xf32> to vector<8x128xf32>
    %18 = vector.extract_strided_slice %14 {offsets = [0, 384], sizes = [8, 128], strides = [1, 1]} : vector<8x768xf32> to vector<8x128xf32>
    %19 = vector.extract_strided_slice %14 {offsets = [0, 512], sizes = [8, 128], strides = [1, 1]} : vector<8x768xf32> to vector<8x128xf32>
    %20 = vector.extract_strided_slice %14 {offsets = [0, 640], sizes = [8, 128], strides = [1, 1]} : vector<8x768xf32> to vector<8x128xf32>
    %21 = arith.mulf %15, %16 : vector<8x128xf32>
    %22 = arith.mulf %15, %19 : vector<8x128xf32>
    %23 = arith.mulf %18, %16 : vector<8x128xf32>
    %24 = arith.mulf %18, %19 : vector<8x128xf32>
    %25 = tpu.concatenate %21, %22, %23, %24 in 1 : vector<8x128xf32>, vector<8x128xf32>, vector<8x128xf32>, vector<8x128xf32> -> vector<8x512xf32>
    %26 = arith.truncf %25 : vector<8x512xf32> to vector<8x512xbf16>
    %c0_11 = arith.constant 0 : index
    %c0_12 = arith.constant 0 : index
    %27 = vector.load %arg6[%c0_11, %c0_12] : memref<512x64xbf16, #tpu.memory_space<vmem>>, vector<512x64xbf16>
    %cst_13 = arith.constant dense<0.000000e+00> : vector<8x64xf32>
    %28 = tpu.matmul %26, %27, %cst_13 {dimension_numbers = #tpu.dot_dimension_numbers<[1], [0], [0], [1], [0, 0, 1, 1], [], []>} : vector<8x512xbf16>, vector<512x64xbf16>, vector<8x64xf32> -> vector<8x64xf32>
    %29 = vector.extract_strided_slice %28 {offsets = [0, 32], sizes = [8, 32], strides = [1, 1]} : vector<8x64xf32> to vector<8x32xf32>
    %30 = vector.extract_strided_slice %28 {offsets = [0, 0], sizes = [8, 32], strides = [1, 1]} : vector<8x64xf32> to vector<8x32xf32>
    %31 = arith.subf %29, %30 : vector<8x32xf32>
    %cst_14 = arith.constant 6.000000e+01 : f32
    %32 = vector.broadcast %cst_14 : f32 to vector<8x32xf32>
    %33 = arith.minimumf %31, %32 : vector<8x32xf32>
    %34 = math.exp %33 : vector<8x32xf32>
    %cst_15 = arith.constant 1.000000e+00 : f32
    %35 = vector.broadcast %cst_15 : f32 to vector<8x32xf32>
    %36 = arith.addf %35, %34 : vector<8x32xf32>
    %37 = tpu.reciprocal %36 {approx = true} : vector<8x32xf32> -> vector<8x32xf32>
    %38 = arith.truncf %37 : vector<8x32xf32> to vector<8x32xbf16>
    %c0_16 = arith.constant 0 : index
    %c0_17 = arith.constant 0 : index
    %39 = vector.load %arg7[%c0_16, %c0_17] : memref<32x512xbf16, #tpu.memory_space<vmem>>, vector<32x512xbf16>
    %cst_18 = arith.constant dense<0.000000e+00> : vector<8x512xf32>
    %40 = tpu.matmul %38, %39, %cst_18 {dimension_numbers = #tpu.dot_dimension_numbers<[1], [0], [0], [1], [0, 0, 1, 1], [], []>} : vector<8x32xbf16>, vector<32x512xbf16>, vector<8x512xf32> -> vector<8x512xf32>
    %41 = tpu.concatenate %17, %20, %17, %20 in 1 : vector<8x128xf32>, vector<8x128xf32>, vector<8x128xf32>, vector<8x128xf32> -> vector<8x512xf32>
    %42 = arith.mulf %40, %41 : vector<8x512xf32>
    %43 = vector.extract_strided_slice %42 {offsets = [0, 0], sizes = [8, 128], strides = [1, 1]} : vector<8x512xf32> to vector<8x128xf32>
    %44 = vector.extract_strided_slice %42 {offsets = [0, 128], sizes = [8, 128], strides = [1, 1]} : vector<8x512xf32> to vector<8x128xf32>
    %45 = arith.addf %43, %44 : vector<8x128xf32>
    %46 = vector.extract_strided_slice %42 {offsets = [0, 256], sizes = [8, 128], strides = [1, 1]} : vector<8x512xf32> to vector<8x128xf32>
    %47 = arith.addf %45, %46 : vector<8x128xf32>
    %48 = vector.extract_strided_slice %42 {offsets = [0, 384], sizes = [8, 128], strides = [1, 1]} : vector<8x512xf32> to vector<8x128xf32>
    %49 = arith.addf %47, %48 : vector<8x128xf32>
    %cst_19 = arith.constant 5.000000e-01 : f32
    %50 = vector.broadcast %cst_19 : f32 to vector<8x128xf32>
    %51 = arith.mulf %50, %49 : vector<8x128xf32>
    %52 = arith.truncf %51 : vector<8x128xf32> to vector<8x128xbf16>
    %c0_20 = arith.constant 0 : index
    %c0_21 = arith.constant 0 : index
    %53 = vector.load %arg8[%c0_20, %c0_21] : memref<128x128xbf16, #tpu.memory_space<vmem>>, vector<128x128xbf16>
    %cst_22 = arith.constant dense<0.000000e+00> : vector<8x128xf32>
    %54 = tpu.matmul %52, %53, %cst_22 {dimension_numbers = #tpu.dot_dimension_numbers<[1], [0], [0], [1], [0, 0, 1, 1], [], []>} : vector<8x128xbf16>, vector<128x128xbf16>, vector<8x128xf32> -> vector<8x128xf32>
    %c0_23 = arith.constant 0 : index
    %c0_24 = arith.constant 0 : index
    %55 = vector.load %arg9[%c0_23, %c0_24] : memref<1x128xf32, #tpu.memory_space<vmem>>, vector<1x128xf32>
    %56 = vector.broadcast %55 : vector<1x128xf32> to vector<8x128xf32>
    %57 = arith.addf %54, %56 : vector<8x128xf32>
    %cst_25 = arith.constant 0.000000e+00 : f32
    %58 = vector.broadcast %cst_25 : f32 to vector<8x128xf32>
    %59 = arith.maximumf %57, %58 : vector<8x128xf32>
    %60 = arith.truncf %59 : vector<8x128xf32> to vector<8x128xbf16>
    %c0_26 = arith.constant 0 : index
    %c0_27 = arith.constant 0 : index
    %61 = vector.load %arg10[%c0_26, %c0_27] : memref<128x8xbf16, #tpu.memory_space<vmem>>, vector<128x8xbf16>
    %cst_28 = arith.constant dense<0.000000e+00> : vector<8x8xf32>
    %62 = tpu.matmul %60, %61, %cst_28 {dimension_numbers = #tpu.dot_dimension_numbers<[1], [0], [0], [1], [0, 0, 1, 1], [], []>} : vector<8x128xbf16>, vector<128x8xbf16>, vector<8x8xf32> -> vector<8x8xf32>
    %c0_29 = arith.constant 0 : index
    %c0_30 = arith.constant 0 : index
    %63 = vector.load %arg11[%c0_29, %c0_30] : memref<1x8xf32, #tpu.memory_space<vmem>>, vector<1x8xf32>
    %64 = vector.broadcast %63 : vector<1x8xf32> to vector<8x8xf32>
    %65 = arith.addf %62, %64 : vector<8x8xf32>
    %c0_31 = arith.constant 0 : index
    %c0_32 = arith.constant 0 : index
    %66 = vector.load %arg12[%c0_31, %c0_32] : memref<8x8xf32, #tpu.memory_space<vmem>>, vector<8x8xf32>
    tpu.vector_store %arg12[%c0_31, %c0_32], %65 {strides = array<i32>} : memref<8x8xf32, #tpu.memory_space<vmem>>, vector<8x8xf32>,
    return
  }
  func.func @transform_0(%arg0: i32) -> (i32, i32) {
    %c0_i32 = arith.constant 0 : i32
    %c0_i32_0 = arith.constant 0 : i32
    return %arg0, %c0_i32 : i32, i32
  }
  func.func @transform_1(%arg0: i32) -> (i32, i32) {
    %c0_i32 = arith.constant 0 : i32
    %c0_i32_0 = arith.constant 0 : i32
    %c0_i32_1 = arith.constant 0 : i32
    return %c0_i32, %c0_i32_0 : i32, i32
  }
  func.func @transform_2(%arg0: i32) -> (i32, i32) {
    %c0_i32 = arith.constant 0 : i32
    %c0_i32_0 = arith.constant 0 : i32
    %c0_i32_1 = arith.constant 0 : i32
    return %c0_i32, %c0_i32_0 : i32, i32
  }
  func.func @transform_3(%arg0: i32) -> (i32, i32) {
    %c0_i32 = arith.constant 0 : i32
    %c0_i32_0 = arith.constant 0 : i32
    %c0_i32_1 = arith.constant 0 : i32
    return %c0_i32, %c0_i32_0 : i32, i32
  }
  func.func @transform_4(%arg0: i32) -> (i32, i32) {
    %c0_i32 = arith.constant 0 : i32
    %c0_i32_0 = arith.constant 0 : i32
    %c0_i32_1 = arith.constant 0 : i32
    return %c0_i32, %c0_i32_0 : i32, i32
  }
  func.func @transform_5(%arg0: i32) -> (i32, i32) {
    %c0_i32 = arith.constant 0 : i32
    %c0_i32_0 = arith.constant 0 : i32
    %c0_i32_1 = arith.constant 0 : i32
    return %c0_i32, %c0_i32_0 : i32, i32
  }
  func.func @transform_6(%arg0: i32) -> (i32, i32) {
    %c0_i32 = arith.constant 0 : i32
    %c0_i32_0 = arith.constant 0 : i32
    %c0_i32_1 = arith.constant 0 : i32
    return %c0_i32, %c0_i32_0 : i32, i32
  }
  func.func @transform_7(%arg0: i32) -> (i32, i32) {
    %c0_i32 = arith.constant 0 : i32
    %c0_i32_0 = arith.constant 0 : i32
    %c0_i32_1 = arith.constant 0 : i32
    return %c0_i32, %c0_i32_0 : i32, i32
  }
  func.func @transform_8(%arg0: i32) -> (i32, i32) {
    %c0_i32 = arith.constant 0 : i32
    %c0_i32_0 = arith.constant 0 : i32
    %c0_i32_1 = arith.constant 0 : i32
    return %c0_i32, %c0_i32_0 : i32, i32
  }
  func.func @transform_9(%arg0: i32) -> (i32, i32) {
    %c0_i32 = arith.constant 0 : i32
    %c0_i32_0 = arith.constant 0 : i32
    %c0_i32_1 = arith.constant 0 : i32
    return %c0_i32, %c0_i32_0 : i32, i32
  }
  func.func @transform_10(%arg0: i32) -> (i32, i32) {
    %c0_i32 = arith.constant 0 : i32
    %c0_i32_0 = arith.constant 0 : i32
    %c0_i32_1 = arith.constant 0 : i32
    return %c0_i32, %c0_i32_0 : i32, i32
  }
  func.func @transform_11(%arg0: i32) -> (i32, i32) {
    %c0_i32 = arith.constant 0 : i32
    %c0_i32_0 = arith.constant 0 : i32
    return %arg0, %c0_i32 : i32, i32
  }
}

</mosaic_0001>

<llo_original>
// kernel: tpu_custom_call.1
$region0: #{tpu_custom_call.1}
  #allocation0 [shape = 'u32[]', space=smem, size = 0x4, offset = 0x4, fixed_abs, tag = 'smem constant byte address 0x4 - core index']
  #allocation1 [shape = 'u32[144,128]{1,0:T(1,128)}', space=vmem, size = 0x12000, scoped, tag = 'internal scratch']
  %s0 = inlined_call_operand.vmem [shape: f32[8,128], index: 0, kind: input, shape index: {}]
  %s1 = inlined_call_operand.vmem [shape: bf16[128,256], index: 1, kind: input, shape index: {}]
  %s2 = inlined_call_operand.vmem [shape: f32[1,256], index: 2, kind: input, shape index: {}]
  %s3 = inlined_call_operand.hbm [shape: bf16[256,768], index: 3, kind: input, shape index: {}]
  %s4 = inlined_call_operand.vmem [shape: f32[1,768], index: 4, kind: input, shape index: {}]
  %s5 = inlined_call_operand.vmem [shape: bf16[512,64], index: 5, kind: input, shape index: {}]
  %s6 = inlined_call_operand.vmem [shape: bf16[32,512], index: 6, kind: input, shape index: {}]
  %s7 = inlined_call_operand.vmem [shape: bf16[128,128], index: 7, kind: input, shape index: {}]
  %s8 = inlined_call_operand.vmem [shape: f32[1,128], index: 8, kind: input, shape index: {}]
  %s9 = inlined_call_operand.vmem [shape: bf16[128,8], index: 9, kind: input, shape index: {}]
  %s10 = inlined_call_operand.vmem [shape: f32[1,8], index: 10, kind: input, shape index: {}]
  %s11 = inlined_call_operand.hbm [shape: f32[8,8], index: 11, kind: output, shape index: {}]
  %s12 = sld [smem:[#allocation0]]
  $region58: #{tpu_custom_call.1} parent=0
    _
  %s14 = ssub.s32 1, %s12
  %s15 = scalar_select 0, %s14, %s12
  $region1: #{tpu_custom_call.1} parent=0
    #allocation2 [shape = 'u8[393216]{0}', space=vmem, size = 0x60000, scoped, tag = 'input window, operand 3, single buffered']
    #allocation3 [shape = 's32[1]{0}', space=sflag, size = 0x4, scoped, tag = 'scoped memory for tpu_custom_call.1']
    #allocation4 [shape = 's32[1]{0}', space=sflag, size = 0x4, scoped, tag = 'scoped memory for tpu_custom_call.1']
    #allocation5 [shape = 'u8[4096]{0}', space=vmem, size = 0x1000, scoped, tag = 'output window, operand 0, single buffered']
    %16 = vsyncpa [#allocation3], 0
    %17 = vsyncpa [#allocation4], 0
    // Predicated region
    $region2: #{tpu_custom_call.1} parent=1 // pred_check
      _
    $region3: #{tpu_custom_call.1} parent=1 // pred_check_branch
      %19 = sbr.rel (0) target = $region5
    $region4: #{tpu_custom_call.1} parent=1 // pred_region
      _
    $region5: #{tpu_custom_call.1} parent=1 // pred_fallthru
      _
    // Predicated region
    $region6: #{tpu_custom_call.1} parent=1 // pred_check
      _
    $region7: #{tpu_custom_call.1} parent=1 // pred_check_branch
      %21 = sbr.rel (0) target = $region9
    $region8: #{tpu_custom_call.1} parent=1 // pred_region
      _
    $region9: #{tpu_custom_call.1} parent=1 // pred_fallthru
      _
    // Predicated region
    $region10: #{tpu_custom_call.1} parent=1 // pred_check
      _
    $region11: #{tpu_custom_call.1} parent=1 // pred_check_branch
      %23 = sbr.rel (0) target = $region13
    $region12: #{tpu_custom_call.1} parent=1 // pred_region
      _
    $region13: #{tpu_custom_call.1} parent=1 // pred_fallthru
      _
    // Predicated region
    $region14: #{tpu_custom_call.1} parent=1 // pred_check
      _
    $region15: #{tpu_custom_call.1} parent=1 // pred_check_branch
      %25 = sbr.rel (0) target = $region17
    $region16: #{tpu_custom_call.1} parent=1 // pred_region
      %s27 = ssub.s32 12288, 12288
      %28 = vsyncadd [#allocation3], %s27
      %s29 = sshll.u32 [#allocation2], 4
      %s30 = int_to_ptr.vmem [resolvable:$true] %s29
      %35 = dma.hbm_to_vmem [thread:$0]  %s3, 12288, %s30, [#allocation3], 384, 384, 24
    $region17: #{tpu_custom_call.1} parent=1 // pred_fallthru
      _
    // Predicated region
    $region18: #{tpu_custom_call.1} parent=1 // pred_check
      _
    $region19: #{tpu_custom_call.1} parent=1 // pred_check_branch
      %37 = sbr.rel (0) target = $region21
    $region20: #{tpu_custom_call.1} parent=1 // pred_region
      _
    $region21: #{tpu_custom_call.1} parent=1 // pred_fallthru
      _
    // Predicated region
    $region22: #{tpu_custom_call.1} parent=1 // pred_check
      _
    $region23: #{tpu_custom_call.1} parent=1 // pred_check_branch
      %39 = sbr.rel (0) target = $region25
    $region24: #{tpu_custom_call.1} parent=1 // pred_region
      _
    $region25: #{tpu_custom_call.1} parent=1 // pred_fallthru
      _
    // Predicated region
    $region26: #{tpu_custom_call.1} parent=1 // pred_check
      _
    $region27: #{tpu_custom_call.1} parent=1 // pred_check_branch
      %41 = sbr.rel (0) target = $region29
    $region28: #{tpu_custom_call.1} parent=1 // pred_region
      _
    $region29: #{tpu_custom_call.1} parent=1 // pred_fallthru
      _
    // Predicated region
    $region30: #{tpu_custom_call.1} parent=1 // pred_check
      _
    $region31: #{tpu_custom_call.1} parent=1 // pred_check_branch
      %43 = sbr.rel (0) target = $region33
    $region32: #{tpu_custom_call.1} parent=1 // pred_region
      _
    $region33: #{tpu_custom_call.1} parent=1 // pred_fallthru
      _
    // Predicated region
    $region34: #{tpu_custom_call.1} parent=1 // pred_check
      _
    $region35: #{tpu_custom_call.1} parent=1 // pred_check_branch
      %45 = sbr.rel (0) target = $region37
    $region36: #{tpu_custom_call.1} parent=1 // pred_region
      _
    $region37: #{tpu_custom_call.1} parent=1 // pred_fallthru
      _
    // Predicated region
    $region38: #{tpu_custom_call.1} parent=1 // pred_check
      _
    $region39: #{tpu_custom_call.1} parent=1 // pred_check_branch
      %47 = sbr.rel (0) target = $region41
    $region40: #{tpu_custom_call.1} parent=1 // pred_region
      _
    $region41: #{tpu_custom_call.1} parent=1 // pred_fallthru
      _
    // Predicated region
    $region42: #{tpu_custom_call.1} parent=1 // pred_check
      _
    $region43: #{tpu_custom_call.1} parent=1 // pred_check_branch
      %49 = sbr.rel (0) target = $region45
    $region44: #{tpu_custom_call.1} parent=1 // pred_region
      _
    $region45: #{tpu_custom_call.1} parent=1 // pred_fallthru
      _
    // Predicated region
    $region46: #{tpu_custom_call.1} parent=1 // pred_check
      _
    $region47: #{tpu_custom_call.1} parent=1 // pred_check_branch
      %51 = sbr.rel (0) target = $region49
    $region48: #{tpu_custom_call.1} parent=1 // pred_region
      %52 = dma.done [#allocation3], 12288
    $region49: #{tpu_custom_call.1} parent=1 // pred_fallthru
      _
    %v54 = vld [vmem:[%s0] sm:$0xff]
    %v55 = vpack.c.bf16 %v54, %v54
    %v56 = vld [vmem:[%s1] sm:$0xff]
    %v57 = vld [vmem:[%s1 + $0x8] sm:$0xff]
    %v58 = vld [vmem:[%s1 + $0x10] sm:$0xff]
    %v59 = vld [vmem:[%s1 + $0x18] sm:$0xff]
    %v60 = vld [vmem:[%s1 + $0x20] sm:$0xff]
    %v61 = vld [vmem:[%s1 + $0x28] sm:$0xff]
    %v62 = vld [vmem:[%s1 + $0x30] sm:$0xff]
    %v63 = vld [vmem:[%s1 + $0x38] sm:$0xff]
    %v64 = vld [vmem:[%s1 + $0x40] sm:$0xff]
    %v65 = vld [vmem:[%s1 + $0x48] sm:$0xff]
    %v66 = vld [vmem:[%s1 + $0x50] sm:$0xff]
    %v67 = vld [vmem:[%s1 + $0x58] sm:$0xff]
    %v68 = vld [vmem:[%s1 + $0x60] sm:$0xff]
    %v69 = vld [vmem:[%s1 + $0x68] sm:$0xff]
    %v70 = vld [vmem:[%s1 + $0x70] sm:$0xff]
    %v71 = vld [vmem:[%s1 + $0x78] sm:$0xff]
    %v72 = vld [vmem:[%s2] sm:$0x3]
    %v74 = vlaneseq
    %v75 = vshrl.u32 %v74, 7
    %v76 = vsub.s32 0, %v75
    %v77 = vrot.slane %v72, %v76
    %v78 = vlaneseq
    %v79 = vshrl.u32 %v78, 7
    %v80 = vsub.s32 1, %v79
    %v81 = vrot.slane %v72, %v80
    %v100 = vunpack.c.l.b16 %v56
    %v101 = vunpack.c.h.b16 %v56
    %v102 = vunpack.c.l.b16 %v57
    %v103 = vunpack.c.h.b16 %v57
    %v104 = vunpack.c.l.b16 %v58
    %v105 = vunpack.c.h.b16 %v58
    %v106 = vunpack.c.l.b16 %v59
    %v107 = vunpack.c.h.b16 %v59
    %v108 = vunpack.c.l.b16 %v60
    %v109 = vunpack.c.h.b16 %v60
    %v110 = vunpack.c.l.b16 %v61
    %v111 = vunpack.c.h.b16 %v61
    %v112 = vunpack.c.l.b16 %v62
    %v113 = vunpack.c.h.b16 %v62
    %v114 = vunpack.c.l.b16 %v63
    %v115 = vunpack.c.h.b16 %v63
    %v116 = vunpack.c.l.b16 %v64
    %v117 = vunpack.c.h.b16 %v64
    %v118 = vunpack.c.l.b16 %v65
    %v119 = vunpack.c.h.b16 %v65
    %v120 = vunpack.c.l.b16 %v66
    %v121 = vunpack.c.h.b16 %v66
    %v122 = vunpack.c.l.b16 %v67
    %v123 = vunpack.c.h.b16 %v67
    %v124 = vunpack.c.l.b16 %v68
    %v125 = vunpack.c.h.b16 %v68
    %v126 = vunpack.c.l.b16 %v69
    %v127 = vunpack.c.h.b16 %v69
    %v128 = vunpack.c.l.b16 %v70
    %v129 = vunpack.c.h.b16 %v70
    %v130 = vunpack.c.l.b16 %v71
    %v131 = vunpack.c.h.b16 %v71
    %v132 = vpack.c.b16 %v102, %v100
    %v133 = vpack.c.b16 %v103, %v101
    %v134 = vpack.c.b16 %v106, %v104
    %v135 = vpack.c.b16 %v107, %v105
    %v136 = vpack.c.b16 %v110, %v108
    %v137 = vpack.c.b16 %v111, %v109
    %v138 = vpack.c.b16 %v114, %v112
    %v139 = vpack.c.b16 %v115, %v113
    %v140 = vpack.c.b16 %v118, %v116
    %v141 = vpack.c.b16 %v119, %v117
    %v142 = vpack.c.b16 %v122, %v120
    %v143 = vpack.c.b16 %v123, %v121
    %v144 = vpack.c.b16 %v126, %v124
    %v145 = vpack.c.b16 %v127, %v125
    %v146 = vpack.c.b16 %v130, %v128
    %v147 = vpack.c.b16 %v131, %v129
    %164 = vmatprep.subr.bf16.mxu0 %v133
    %165 = vmatpush1.bf16.msra.mxu0 %v132
    %166 = vmatprep.subr.bf16.mxu0 %v135
    %167 = vmatpush1.bf16.msra.mxu0 %v134
    %168 = vmatprep.subr.bf16.mxu0 %v137
    %169 = vmatpush1.bf16.msra.mxu0 %v136
    %170 = vmatprep.subr.bf16.mxu0 %v139
    %171 = vmatpush1.bf16.msra.mxu0 %v138
    %172 = vmatprep.subr.bf16.mxu0 %v141
    %173 = vmatpush1.bf16.msra.mxu0 %v140
    %174 = vmatprep.subr.bf16.mxu0 %v143
    %175 = vmatpush1.bf16.msra.mxu0 %v142
    %176 = vmatprep.subr.bf16.mxu0 %v145
    %177 = vmatpush1.bf16.msra.mxu0 %v144
    %178 = vmatprep.subr.bf16.mxu0 %v147
    %179 = vmatpush1.bf16.msra.mxu0 %v146
    %180 = vmatprep.subr.bf16.mxu0 0
    %181 = vmatpush1.bf16.msra.mxu0 0
    %182 = vmatprep.subr.bf16.mxu0 0
    %183 = vmatpush1.bf16.msra.mxu0 0
    %184 = vmatprep.subr.bf16.mxu0 0
    %185 = vmatpush1.bf16.msra.mxu0 0
    %186 = vmatprep.subr.bf16.mxu0 0
    %187 = vmatpush1.bf16.msra.mxu0 0
    %188 = vmatprep.subr.bf16.mxu0 0
    %189 = vmatpush1.bf16.msra.mxu0 0
    %190 = vmatprep.subr.bf16.mxu0 0
    %191 = vmatpush1.bf16.msra.mxu0 0
    %192 = vmatprep.subr.bf16.mxu0 0
    %193 = vmatpush1.bf16.msra.mxu0 0
    %194 = vmatprep.subr.bf16.mxu0 0
    %195 = vmatpush1.bf16.msra.mxu0 0
    %196 = vmatprep.mubr.bf16.mxu0 0
    %197 = vmatmul.mubr.bf16.gmra.mrb[0].mxu0 %v55
    %v198 = vpop.f32.mrb[0].mxu0
    %v199 = vadd.f32 %v77, %v198
    %v200 = vpop.f32.mrb[0].mxu0
    %v201 = vadd.f32 %v81, %v200
    %v202 = vpop.f32.mrb[0].mxu0
    %v203 = vpop.f32.mrb[0].mxu0
    %204 = vdwg.mxu0
    %v205 = vmax.f32 %v199, 0.0
    %v206 = vmax.f32 %v201, 0.0
    %v207 = vpack.c.bf16 %v205, %v205
    %v208 = vpack.c.bf16 %v206, %v206
    %v209 = vld [vmem:[#allocation2] sm:$0xff]
    %v210 = vld [vmem:[#allocation2 + $0x8] sm:$0xff]
    %v211 = vld [vmem:[#allocation2 + $0x10] sm:$0xff]
    %v212 = vld [vmem:[#allocation2 + $0x18] sm:$0xff]
    %v213 = vld [vmem:[#allocation2 + $0x20] sm:$0xff]
    %v214 = vld [vmem:[#allocation2 + $0x28] sm:$0xff]
    %v215 = vld [vmem:[#allocation2 + $0x30] sm:$0xff]
    %v216 = vld [vmem:[#allocation2 + $0x38] sm:$0xff]
    %v217 = vld [vmem:[#allocation2 + $0x40] sm:$0xff]
    %v218 = vld [vmem:[#allocation2 + $0x48] sm:$0xff]
    %v219 = vld [vmem:[#allocation2 + $0x50] sm:$0xff]
    %v220 = vld [vmem:[#allocation2 + $0x58] sm:$0xff]
    %v221 = vld [vmem:[#allocation2 + $0x60] sm:$0xff]
    %v222 = vld [vmem:[#allocation2 + $0x68] sm:$0xff]
    %v223 = vld [vmem:[#allocation2 + $0x70] sm:$0xff]
    %v224 = vld [vmem:[#allocation2 + $0x78] sm:$0xff]
    %v225 = vld [vmem:[#allocation2 + $0x80] sm:$0xff]
    %v226 = vld [vmem:[#allocation2 + $0x88] sm:$0xff]
    %v227 = vld [vmem:[#allocation2 + $0x90] sm:$0xff]
    %v228 = vld [vmem:[#allocation2 + $0x98] sm:$0xff]
    %v229 = vld [vmem:[#allocation2 + $0xa0] sm:$0xff]
    %v230 = vld [vmem:[#allocation2 + $0xa8] sm:$0xff]
    %v231 = vld [vmem:[#allocation2 + $0xb0] sm:$0xff]
    %v232 = vld [vmem:[#allocation2 + $0xb8] sm:$0xff]
    %v233 = vld [vmem:[#allocation2 + $0xc0] sm:$0xff]
    %v234 = vld [vmem:[#allocation2 + $0xc8] sm:$0xff]
    %v235 = vld [vmem:[#allocation2 + $0xd0] sm:$0xff]
    %v236 = vld [vmem:[#allocation2 + $0xd8] sm:$0xff]
    %v237 = vld [vmem:[#allocation2 + $0xe0] sm:$0xff]
    %v238 = vld [vmem:[#allocation2 + $0xe8] sm:$0xff]
    %v239 = vld [vmem:[#allocation2 + $0xf0] sm:$0xff]
    %v240 = vld [vmem:[#allocation2 + $0xf8] sm:$0xff]
    %v241 = vld [vmem:[#allocation2 + $0x100] sm:$0xff]
    %v242 = vld [vmem:[#allocation2 + $0x108] sm:$0xff]
    %v243 = vld [vmem:[#allocation2 + $0x110] sm:$0xff]
    %v244 = vld [vmem:[#allocation2 + $0x118] sm:$0xff]
    %v245 = vld [vmem:[#allocation2 + $0x120] sm:$0xff]
    %v246 = vld [vmem:[#allocation2 + $0x128] sm:$0xff]
    %v247 = vld [vmem:[#allocation2 + $0x130] sm:$0xff]
    %v248 = vld [vmem:[#allocation2 + $0x138] sm:$0xff]
    %v249 = vld [vmem:[#allocation2 + $0x140] sm:$0xff]
    %v250 = vld [vmem:[#allocation2 + $0x148] sm:$0xff]
    %v251 = vld [vmem:[#allocation2 + $0x150] sm:$0xff]
    %v252 = vld [vmem:[#allocation2 + $0x158] sm:$0xff]
    %v253 = vld [vmem:[#allocation2 + $0x160] sm:$0xff]
    %v254 = vld [vmem:[#allocation2 + $0x168] sm:$0xff]
    %v255 = vld [vmem:[#allocation2 + $0x170] sm:$0xff]
    %v256 = vld [vmem:[#allocation2 + $0x178] sm:$0xff]
    %v257 = vld [vmem:[#allocation2 + $0x180] sm:$0xff]
    %v258 = vld [vmem:[#allocation2 + $0x188] sm:$0xff]
    %v259 = vld [vmem:[#allocation2 + $0x190] sm:$0xff]
    %v260 = vld [vmem:[#allocation2 + $0x198] sm:$0xff]
    %v261 = vld [vmem:[#allocation2 + $0x1a0] sm:$0xff]
    %v262 = vld [vmem:[#allocation2 + $0x1a8] sm:$0xff]
    %v263 = vld [vmem:[#allocation2 + $0x1b0] sm:$0xff]
    %v264 = vld [vmem:[#allocation2 + $0x1b8] sm:$0xff]
    %v265 = vld [vmem:[#allocation2 + $0x1c0] sm:$0xff]
    %v266 = vld [vmem:[#allocation2 + $0x1c8] sm:$0xff]
    %v267 = vld [vmem:[#allocation2 + $0x1d0] sm:$0xff]
    %v268 = vld [vmem:[#allocation2 + $0x1d8] sm:$0xff]
    %v269 = vld [vmem:[#allocation2 + $0x1e0] sm:$0xff]
    %v270 = vld [vmem:[#allocation2 + $0x1e8] sm:$0xff]
    %v271 = vld [vmem:[#allocation2 + $0x1f0] sm:$0xff]
    %v272 = vld [vmem:[#allocation2 + $0x1f8] sm:$0xff]
    %v273 = vld [vmem:[#allocation2 + $0x200] sm:$0xff]
    %v274 = vld [vmem:[#allocation2 + $0x208] sm:$0xff]
    %v275 = vld [vmem:[#allocation2 + $0x210] sm:$0xff]
    %v276 = vld [vmem:[#allocation2 + $0x218] sm:$0xff]
    %v277 = vld [vmem:[#allocation2 + $0x220] sm:$0xff]
    %v278 = vld [vmem:[#allocation2 + $0x228] sm:$0xff]
    %v279 = vld [vmem:[#allocation2 + $0x230] sm:$0xff]
    %v280 = vld [vmem:[#allocation2 + $0x238] sm:$0xff]
    %v281 = vld [vmem:[#allocation2 + $0x240] sm:$0xff]
    %v282 = vld [vmem:[#allocation2 + $0x248] sm:$0xff]
    %v283 = vld [vmem:[#allocation2 + $0x250] sm:$0xff]
    %v284 = vld [vmem:[#allocation2 + $0x258] sm:$0xff]
    %v285 = vld [vmem:[#allocation2 + $0x260] sm:$0xff]
    %v286 = vld [vmem:[#allocation2 + $0x268] sm:$0xff]
    %v287 = vld [vmem:[#allocation2 + $0x270] sm:$0xff]
    %v288 = vld [vmem:[#allocation2 + $0x278] sm:$0xff]
    %v289 = vld [vmem:[#allocation2 + $0x280] sm:$0xff]
    %v290 = vld [vmem:[#allocation2 + $0x288] sm:$0xff]
    %v291 = vld [vmem:[#allocation2 + $0x290] sm:$0xff]
    %v292 = vld [vmem:[#allocation2 + $0x298] sm:$0xff]
    %v293 = vld [vmem:[#allocation2 + $0x2a0] sm:$0xff]
    %v294 = vld [vmem:[#allocation2 + $0x2a8] sm:$0xff]
    %v295 = vld [vmem:[#allocation2 + $0x2b0] sm:$0xff]
    %v296 = vld [vmem:[#allocation2 + $0x2b8] sm:$0xff]
    %v297 = vld [vmem:[#allocation2 + $0x2c0] sm:$0xff]
    %v298 = vld [vmem:[#allocation2 + $0x2c8] sm:$0xff]
    %v299 = vld [vmem:[#allocation2 + $0x2d0] sm:$0xff]
    %v300 = vld [vmem:[#allocation2 + $0x2d8] sm:$0xff]
    %v301 = vld [vmem:[#allocation2 + $0x2e0] sm:$0xff]
    %v302 = vld [vmem:[#allocation2 + $0x2e8] sm:$0xff]
    %v303 = vld [vmem:[#allocation2 + $0x2f0] sm:$0xff]
    %v304 = vld [vmem:[#allocation2 + $0x2f8] sm:$0xff]
    %v305 = vld [vmem:[%s4] sm:$0x3f]
    %v307 = vlaneseq
    %v308 = vshrl.u32 %v307, 7
    %v309 = vsub.s32 0, %v308
    %v310 = vrot.slane %v305, %v309
    %v311 = vlaneseq
    %v312 = vshrl.u32 %v311, 7
    %v313 = vsub.s32 1, %v312
    %v314 = vrot.slane %v305, %v313
    %v315 = vlaneseq
    %v316 = vshrl.u32 %v315, 7
    %v317 = vsub.s32 2, %v316
    %v318 = vrot.slane %v305, %v317
    %v319 = vlaneseq
    %v320 = vshrl.u32 %v319, 7
    %v321 = vsub.s32 3, %v320
    %v322 = vrot.slane %v305, %v321
    %v323 = vlaneseq
    %v324 = vshrl.u32 %v323, 7
    %v325 = vsub.s32 4, %v324
    %v326 = vrot.slane %v305, %v325
    %v327 = vlaneseq
    %v328 = vshrl.u32 %v327, 7
    %v329 = vsub.s32 5, %v328
    %v330 = vrot.slane %v305, %v329
    %v433 = vunpack.c.l.b16 %v209
    %v434 = vunpack.c.h.b16 %v209
    %v435 = vunpack.c.l.b16 %v210
    %v436 = vunpack.c.h.b16 %v210
    %v437 = vunpack.c.l.b16 %v211
    %v438 = vunpack.c.h.b16 %v211
    %v439 = vunpack.c.l.b16 %v212
    %v440 = vunpack.c.h.b16 %v212
    %v441 = vunpack.c.l.b16 %v213
    %v442 = vunpack.c.h.b16 %v213
    %v443 = vunpack.c.l.b16 %v214
    %v444 = vunpack.c.h.b16 %v214
    %v445 = vunpack.c.l.b16 %v215
    %v446 = vunpack.c.h.b16 %v215
    %v447 = vunpack.c.l.b16 %v216
    %v448 = vunpack.c.h.b16 %v216
    %v449 = vunpack.c.l.b16 %v217
    %v450 = vunpack.c.h.b16 %v217
    %v451 = vunpack.c.l.b16 %v218
    %v452 = vunpack.c.h.b16 %v218
    %v453 = vunpack.c.l.b16 %v219
    %v454 = vunpack.c.h.b16 %v219
    %v455 = vunpack.c.l.b16 %v220
    %v456 = vunpack.c.h.b16 %v220
    %v457 = vunpack.c.l.b16 %v221
    %v458 = vunpack.c.h.b16 %v221
    %v459 = vunpack.c.l.b16 %v222
    %v460 = vunpack.c.h.b16 %v222
    %v461 = vunpack.c.l.b16 %v223
    %v462 = vunpack.c.h.b16 %v223
    %v463 = vunpack.c.l.b16 %v224
    %v464 = vunpack.c.h.b16 %v224
    %v465 = vunpack.c.l.b16 %v225
    %v466 = vunpack.c.h.b16 %v225
    %v467 = vunpack.c.l.b16 %v226
    %v468 = vunpack.c.h.b16 %v226
    %v469 = vunpack.c.l.b16 %v227
    %v470 = vunpack.c.h.b16 %v227
    %v471 = vunpack.c.l.b16 %v228
    %v472 = vunpack.c.h.b16 %v228
    %v473 = vunpack.c.l.b16 %v229
    %v474 = vunpack.c.h.b16 %v229
    %v475 = vunpack.c.l.b16 %v230
    %v476 = vunpack.c.h.b16 %v230
    %v477 = vunpack.c.l.b16 %v231
    %v478 = vunpack.c.h.b16 %v231
    %v479 = vunpack.c.l.b16 %v232
    %v480 = vunpack.c.h.b16 %v232
    %v481 = vunpack.c.l.b16 %v233
    %v482 = vunpack.c.h.b16 %v233
    %v483 = vunpack.c.l.b16 %v234
    %v484 = vunpack.c.h.b16 %v234
    %v485 = vunpack.c.l.b16 %v235
    %v486 = vunpack.c.h.b16 %v235
    %v487 = vunpack.c.l.b16 %v236
    %v488 = vunpack.c.h.b16 %v236
    %v489 = vunpack.c.l.b16 %v237
    %v490 = vunpack.c.h.b16 %v237
    %v491 = vunpack.c.l.b16 %v238
    %v492 = vunpack.c.h.b16 %v238
    %v493 = vunpack.c.l.b16 %v239
    %v494 = vunpack.c.h.b16 %v239
    %v495 = vunpack.c.l.b16 %v240
    %v496 = vunpack.c.h.b16 %v240
    %v497 = vunpack.c.l.b16 %v241
    %v498 = vunpack.c.h.b16 %v241
    %v499 = vunpack.c.l.b16 %v242
    %v500 = vunpack.c.h.b16 %v242
    %v501 = vunpack.c.l.b16 %v243
    %v502 = vunpack.c.h.b16 %v243
    %v503 = vunpack.c.l.b16 %v244
    %v504 = vunpack.c.h.b16 %v244
    %v505 = vunpack.c.l.b16 %v245
    %v506 = vunpack.c.h.b16 %v245
    %v507 = vunpack.c.l.b16 %v246
    %v508 = vunpack.c.h.b16 %v246
    %v509 = vunpack.c.l.b16 %v247
    %v510 = vunpack.c.h.b16 %v247
    %v511 = vunpack.c.l.b16 %v248
    %v512 = vunpack.c.h.b16 %v248
    %v513 = vunpack.c.l.b16 %v249
    %v514 = vunpack.c.h.b16 %v249
    %v515 = vunpack.c.l.b16 %v250
    %v516 = vunpack.c.h.b16 %v250
    %v517 = vunpack.c.l.b16 %v251
    %v518 = vunpack.c.h.b16 %v251
    %v519 = vunpack.c.l.b16 %v252
    %v520 = vunpack.c.h.b16 %v252
    %v521 = vunpack.c.l.b16 %v253
    %v522 = vunpack.c.h.b16 %v253
    %v523 = vunpack.c.l.b16 %v254
    %v524 = vunpack.c.h.b16 %v254
    %v525 = vunpack.c.l.b16 %v255
    %v526 = vunpack.c.h.b16 %v255
    %v527 = vunpack.c.l.b16 %v256
    %v528 = vunpack.c.h.b16 %v256
    %v529 = vunpack.c.l.b16 %v257
    %v530 = vunpack.c.h.b16 %v257
    %v531 = vunpack.c.l.b16 %v258
    %v532 = vunpack.c.h.b16 %v258
    %v533 = vunpack.c.l.b16 %v259
    %v534 = vunpack.c.h.b16 %v259
    %v535 = vunpack.c.l.b16 %v260
    %v536 = vunpack.c.h.b16 %v260
    %v537 = vunpack.c.l.b16 %v261
    %v538 = vunpack.c.h.b16 %v261
    %v539 = vunpack.c.l.b16 %v262
    %v540 = vunpack.c.h.b16 %v262
    %v541 = vunpack.c.l.b16 %v263
    %v542 = vunpack.c.h.b16 %v263
    %v543 = vunpack.c.l.b16 %v264
    %v544 = vunpack.c.h.b16 %v264
    %v545 = vunpack.c.l.b16 %v265
    %v546 = vunpack.c.h.b16 %v265
    %v547 = vunpack.c.l.b16 %v266
    %v548 = vunpack.c.h.b16 %v266
    %v549 = vunpack.c.l.b16 %v267
    %v550 = vunpack.c.h.b16 %v267
    %v551 = vunpack.c.l.b16 %v268
    %v552 = vunpack.c.h.b16 %v268
    %v553 = vunpack.c.l.b16 %v269
    %v554 = vunpack.c.h.b16 %v269
    %v555 = vunpack.c.l.b16 %v270
    %v556 = vunpack.c.h.b16 %v270
    %v557 = vunpack.c.l.b16 %v271
    %v558 = vunpack.c.h.b16 %v271
    %v559 = vunpack.c.l.b16 %v272
    %v560 = vunpack.c.h.b16 %v272
    %v561 = vunpack.c.l.b16 %v273
    %v562 = vunpack.c.h.b16 %v273
    %v563 = vunpack.c.l.b16 %v274
    %v564 = vunpack.c.h.b16 %v274
    %v565 = vunpack.c.l.b16 %v275
    %v566 = vunpack.c.h.b16 %v275
    %v567 = vunpack.c.l.b16 %v276
    %v568 = vunpack.c.h.b16 %v276
    %v569 = vunpack.c.l.b16 %v277
    %v570 = vunpack.c.h.b16 %v277
    %v571 = vunpack.c.l.b16 %v278
    %v572 = vunpack.c.h.b16 %v278
    %v573 = vunpack.c.l.b16 %v279
    %v574 = vunpack.c.h.b16 %v279
    %v575 = vunpack.c.l.b16 %v280
    %v576 = vunpack.c.h.b16 %v280
    %v577 = vunpack.c.l.b16 %v281
    %v578 = vunpack.c.h.b16 %v281
    %v579 = vunpack.c.l.b16 %v282
    %v580 = vunpack.c.h.b16 %v282
    %v581 = vunpack.c.l.b16 %v283
    %v582 = vunpack.c.h.b16 %v283
    %v583 = vunpack.c.l.b16 %v284
    %v584 = vunpack.c.h.b16 %v284
    %v585 = vunpack.c.l.b16 %v285
    %v586 = vunpack.c.h.b16 %v285
    %v587 = vunpack.c.l.b16 %v286
    %v588 = vunpack.c.h.b16 %v286
    %v589 = vunpack.c.l.b16 %v287
    %v590 = vunpack.c.h.b16 %v287
    %v591 = vunpack.c.l.b16 %v288
    %v592 = vunpack.c.h.b16 %v288
    %v593 = vunpack.c.l.b16 %v289
    %v594 = vunpack.c.h.b16 %v289
    %v595 = vunpack.c.l.b16 %v290
    %v596 = vunpack.c.h.b16 %v290
    %v597 = vunpack.c.l.b16 %v291
    %v598 = vunpack.c.h.b16 %v291
    %v599 = vunpack.c.l.b16 %v292
    %v600 = vunpack.c.h.b16 %v292
    %v601 = vunpack.c.l.b16 %v293
    %v602 = vunpack.c.h.b16 %v293
    %v603 = vunpack.c.l.b16 %v294
    %v604 = vunpack.c.h.b16 %v294
    %v605 = vunpack.c.l.b16 %v295
    %v606 = vunpack.c.h.b16 %v295
    %v607 = vunpack.c.l.b16 %v296
    %v608 = vunpack.c.h.b16 %v296
    %v609 = vunpack.c.l.b16 %v297
    %v610 = vunpack.c.h.b16 %v297
    %v611 = vunpack.c.l.b16 %v298
    %v612 = vunpack.c.h.b16 %v298
    %v613 = vunpack.c.l.b16 %v299
    %v614 = vunpack.c.h.b16 %v299
    %v615 = vunpack.c.l.b16 %v300
    %v616 = vunpack.c.h.b16 %v300
    %v617 = vunpack.c.l.b16 %v301
    %v618 = vunpack.c.h.b16 %v301
    %v619 = vunpack.c.l.b16 %v302
    %v620 = vunpack.c.h.b16 %v302
    %v621 = vunpack.c.l.b16 %v303
    %v622 = vunpack.c.h.b16 %v303
    %v623 = vunpack.c.l.b16 %v304
    %v624 = vunpack.c.h.b16 %v304
    %v625 = vpack.c.b16 %v439, %v433
    %v626 = vpack.c.b16 %v440, %v434
    %v627 = vpack.c.b16 %v441, %v435
    %v628 = vpack.c.b16 %v442, %v436
    %v629 = vpack.c.b16 %v443, %v437
    %v630 = vpack.c.b16 %v444, %v438
    %v631 = vpack.c.b16 %v451, %v445
    %v632 = vpack.c.b16 %v452, %v446
    %v633 = vpack.c.b16 %v453, %v447
    %v634 = vpack.c.b16 %v454, %v448
    %v635 = vpack.c.b16 %v455, %v449
    %v636 = vpack.c.b16 %v456, %v450
    %v637 = vpack.c.b16 %v463, %v457
    %v638 = vpack.c.b16 %v464, %v458
    %v639 = vpack.c.b16 %v465, %v459
    %v640 = vpack.c.b16 %v466, %v460
    %v641 = vpack.c.b16 %v467, %v461
    %v642 = vpack.c.b16 %v468, %v462
    %v643 = vpack.c.b16 %v475, %v469
    %v644 = vpack.c.b16 %v476, %v470
    %v645 = vpack.c.b16 %v477, %v471
    %v646 = vpack.c.b16 %v478, %v472
    %v647 = vpack.c.b16 %v479, %v473
    %v648 = vpack.c.b16 %v480, %v474
    %v649 = vpack.c.b16 %v487, %v481
    %v650 = vpack.c.b16 %v488, %v482
    %v651 = vpack.c.b16 %v489, %v483
    %v652 = vpack.c.b16 %v490, %v484
    %v653 = vpack.c.b16 %v491, %v485
    %v654 = vpack.c.b16 %v492, %v486
    %v655 = vpack.c.b16 %v499, %v493
    %v656 = vpack.c.b16 %v500, %v494
    %v657 = vpack.c.b16 %v501, %v495
    %v658 = vpack.c.b16 %v502, %v496
    %v659 = vpack.c.b16 %v503, %v497
    %v660 = vpack.c.b16 %v504, %v498
    %v661 = vpack.c.b16 %v511, %v505
    %v662 = vpack.c.b16 %v512, %v506
    %v663 = vpack.c.b16 %v513, %v507
    %v664 = vpack.c.b16 %v514, %v508
    %v665 = vpack.c.b16 %v515, %v509
    %v666 = vpack.c.b16 %v516, %v510
    %v667 = vpack.c.b16 %v523, %v517
    %v668 = vpack.c.b16 %v524, %v518
    %v669 = vpack.c.b16 %v525, %v519
    %v670 = vpack.c.b16 %v526, %v520
    %v671 = vpack.c.b16 %v527, %v521
    %v672 = vpack.c.b16 %v528, %v522
    %v673 = vpack.c.b16 %v535, %v529
    %v674 = vpack.c.b16 %v536, %v530
    %v675 = vpack.c.b16 %v537, %v531
    %v676 = vpack.c.b16 %v538, %v532
    %v677 = vpack.c.b16 %v539, %v533
    %v678 = vpack.c.b16 %v540, %v534
    %v679 = vpack.c.b16 %v547, %v541
    %v680 = vpack.c.b16 %v548, %v542
    %v681 = vpack.c.b16 %v549, %v543
    %v682 = vpack.c.b16 %v550, %v544
    %v683 = vpack.c.b16 %v551, %v545
    %v684 = vpack.c.b16 %v552, %v546
    %v685 = vpack.c.b16 %v559, %v553
    %v686 = vpack.c.b16 %v560, %v554
    %v687 = vpack.c.b16 %v561, %v555
    %v688 = vpack.c.b16 %v562, %v556
    %v689 = vpack.c.b16 %v563, %v557
    %v690 = vpack.c.b16 %v564, %v558
    %v691 = vpack.c.b16 %v571, %v565
    %v692 = vpack.c.b16 %v572, %v566
    %v693 = vpack.c.b16 %v573, %v567
    %v694 = vpack.c.b16 %v574, %v568
    %v695 = vpack.c.b16 %v575, %v569
    %v696 = vpack.c.b16 %v576, %v570
    %v697 = vpack.c.b16 %v583, %v577
    %v698 = vpack.c.b16 %v584, %v578
    %v699 = vpack.c.b16 %v585, %v579
    %v700 = vpack.c.b16 %v586, %v580
    %v701 = vpack.c.b16 %v587, %v581
    %v702 = vpack.c.b16 %v588, %v582
    %v703 = vpack.c.b16 %v595, %v589
    %v704 = vpack.c.b16 %v596, %v590
    %v705 = vpack.c.b16 %v597, %v591
    %v706 = vpack.c.b16 %v598, %v592
    %v707 = vpack.c.b16 %v599, %v593
    %v708 = vpack.c.b16 %v600, %v594
    %v709 = vpack.c.b16 %v607, %v601
    %v710 = vpack.c.b16 %v608, %v602
    %v711 = vpack.c.b16 %v609, %v603
    %v712 = vpack.c.b16 %v610, %v604
    %v713 = vpack.c.b16 %v611, %v605
    %v714 = vpack.c.b16 %v612, %v606
    %v715 = vpack.c.b16 %v619, %v613
    %v716 = vpack.c.b16 %v620, %v614
    %v717 = vpack.c.b16 %v621, %v615
    %v718 = vpack.c.b16 %v622, %v616
    %v719 = vpack.c.b16 %v623, %v617
    %v720 = vpack.c.b16 %v624, %v618
    %817 = vmatprep.subr.bf16.mxu0 %v626
    %818 = vmatpush1.bf16.msra.mxu0 %v625
    %819 = vmatprep.subr.bf16.mxu0 %v632
    %820 = vmatpush1.bf16.msra.mxu0 %v631
    %821 = vmatprep.subr.bf16.mxu0 %v638
    %822 = vmatpush1.bf16.msra.mxu0 %v637
    %823 = vmatprep.subr.bf16.mxu0 %v644
    %824 = vmatpush1.bf16.msra.mxu0 %v643
    %825 = vmatprep.subr.bf16.mxu0 %v650
    %826 = vmatpush1.bf16.msra.mxu0 %v649
    %827 = vmatprep.subr.bf16.mxu0 %v656
    %828 = vmatpush1.bf16.msra.mxu0 %v655
    %829 = vmatprep.subr.bf16.mxu0 %v662
    %830 = vmatpush1.bf16.msra.mxu0 %v661
    %831 = vmatprep.subr.bf16.mxu0 %v668
    %832 = vmatpush1.bf16.msra.mxu0 %v667
    %833 = vmatprep.subr.bf16.mxu0 %v674
    %834 = vmatpush1.bf16.msra.mxu0 %v673
    %835 = vmatprep.subr.bf16.mxu0 %v680
    %836 = vmatpush1.bf16.msra.mxu0 %v679
    %837 = vmatprep.subr.bf16.mxu0 %v686
    %838 = vmatpush1.bf16.msra.mxu0 %v685
    %839 = vmatprep.subr.bf16.mxu0 %v692
    %840 = vmatpush1.bf16.msra.mxu0 %v691
    %841 = vmatprep.subr.bf16.mxu0 %v698
    %842 = vmatpush1.bf16.msra.mxu0 %v697
    %843 = vmatprep.subr.bf16.mxu0 %v704
    %844 = vmatpush1.bf16.msra.mxu0 %v703
    %845 = vmatprep.subr.bf16.mxu0 %v710
    %846 = vmatpush1.bf16.msra.mxu0 %v709
    %847 = vmatprep.subr.bf16.mxu0 %v716
    %848 = vmatpush1.bf16.msra.mxu0 %v715
    %849 = vmatprep.mubr.bf16.mxu0 %v208
    %850 = vmatmul.mubr.bf16.gmra.mrb[0].mxu0 %v207
    %v851 = vpop.f32.mrb[0].mxu0
    %v852 = vadd.f32 %v310, %v851
    %v853 = vpop.f32.mrb[0].mxu0
    %v854 = vadd.f32 %v314, %v853
    %v855 = vpop.f32.mrb[0].mxu0
    %v856 = vpop.f32.mrb[0].mxu0
    %857 = vdwg.mxu0
    %858 = vmatprep.subr.bf16.mxu0 %v628
    %859 = vmatpush1.bf16.msra.mxu0 %v627
    %860 = vmatprep.subr.bf16.mxu0 %v634
    %861 = vmatpush1.bf16.msra.mxu0 %v633
    %862 = vmatprep.subr.bf16.mxu0 %v640
    %863 = vmatpush1.bf16.msra.mxu0 %v639
    %864 = vmatprep.subr.bf16.mxu0 %v646
    %865 = vmatpush1.bf16.msra.mxu0 %v645
    %866 = vmatprep.subr.bf16.mxu0 %v652
    %867 = vmatpush1.bf16.msra.mxu0 %v651
    %868 = vmatprep.subr.bf16.mxu0 %v658
    %869 = vmatpush1.bf16.msra.mxu0 %v657
    %870 = vmatprep.subr.bf16.mxu0 %v664
    %871 = vmatpush1.bf16.msra.mxu0 %v663
    %872 = vmatprep.subr.bf16.mxu0 %v670
    %873 = vmatpush1.bf16.msra.mxu0 %v669
    %874 = vmatprep.subr.bf16.mxu0 %v676
    %875 = vmatpush1.bf16.msra.mxu0 %v675
    %876 = vmatprep.subr.bf16.mxu0 %v682
    %877 = vmatpush1.bf16.msra.mxu0 %v681
    %878 = vmatprep.subr.bf16.mxu0 %v688
    %879 = vmatpush1.bf16.msra.mxu0 %v687
    %880 = vmatprep.subr.bf16.mxu0 %v694
    %881 = vmatpush1.bf16.msra.mxu0 %v693
    %882 = vmatprep.subr.bf16.mxu0 %v700
    %883 = vmatpush1.bf16.msra.mxu0 %v699
    %884 = vmatprep.subr.bf16.mxu0 %v706
    %885 = vmatpush1.bf16.msra.mxu0 %v705
    %886 = vmatprep.subr.bf16.mxu0 %v712
    %887 = vmatpush1.bf16.msra.mxu0 %v711
    %888 = vmatprep.subr.bf16.mxu0 %v718
    %889 = vmatpush1.bf16.msra.mxu0 %v717
    %890 = vmatprep.mubr.bf16.mxu0 %v208
    %891 = vmatmul.mubr.bf16.gmra.mrb[0].mxu0 %v207
    %v892 = vpop.f32.mrb[0].mxu0
    %v893 = vadd.f32 %v318, %v892
    %v894 = vpop.f32.mrb[0].mxu0
    %v895 = vadd.f32 %v322, %v894
    %v896 = vpop.f32.mrb[0].mxu0
    %v897 = vpop.f32.mrb[0].mxu0
    %898 = vdwg.mxu0
    %899 = vmatprep.subr.bf16.mxu0 %v630
    %900 = vmatpush1.bf16.msra.mxu0 %v629
    %901 = vmatprep.subr.bf16.mxu0 %v636
    %902 = vmatpush1.bf16.msra.mxu0 %v635
    %903 = vmatprep.subr.bf16.mxu0 %v642
    %904 = vmatpush1.bf16.msra.mxu0 %v641
    %905 = vmatprep.subr.bf16.mxu0 %v648
    %906 = vmatpush1.bf16.msra.mxu0 %v647
    %907 = vmatprep.subr.bf16.mxu0 %v654
    %908 = vmatpush1.bf16.msra.mxu0 %v653
    %909 = vmatprep.subr.bf16.mxu0 %v660
    %910 = vmatpush1.bf16.msra.mxu0 %v659
    %911 = vmatprep.subr.bf16.mxu0 %v666
    %912 = vmatpush1.bf16.msra.mxu0 %v665
    %913 = vmatprep.subr.bf16.mxu0 %v672
    %914 = vmatpush1.bf16.msra.mxu0 %v671
    %915 = vmatprep.subr.bf16.mxu0 %v678
    %916 = vmatpush1.bf16.msra.mxu0 %v677
    %917 = vmatprep.subr.bf16.mxu0 %v684
    %918 = vmatpush1.bf16.msra.mxu0 %v683
    %919 = vmatprep.subr.bf16.mxu0 %v690
    %920 = vmatpush1.bf16.msra.mxu0 %v689
    %921 = vmatprep.subr.bf16.mxu0 %v696
    %922 = vmatpush1.bf16.msra.mxu0 %v695
    %923 = vmatprep.subr.bf16.mxu0 %v702
    %924 = vmatpush1.bf16.msra.mxu0 %v701
    %925 = vmatprep.subr.bf16.mxu0 %v708
    %926 = vmatpush1.bf16.msra.mxu0 %v707
    %927 = vmatprep.subr.bf16.mxu0 %v714
    %928 = vmatpush1.bf16.msra.mxu0 %v713
    %929 = vmatprep.subr.bf16.mxu0 %v720
    %930 = vmatpush1.bf16.msra.mxu0 %v719
    %931 = vmatprep.mubr.bf16.mxu0 %v208
    %932 = vmatmul.mubr.bf16.gmra.mrb[0].mxu0 %v207
    %v933 = vpop.f32.mrb[0].mxu0
    %v934 = vadd.f32 %v326, %v933
    %v935 = vpop.f32.mrb[0].mxu0
    %v936 = vadd.f32 %v330, %v935
    %v937 = vpop.f32.mrb[0].mxu0
    %v938 = vpop.f32.mrb[0].mxu0
    %939 = vdwg.mxu0
    %v940 = vmul.f32 %v852, %v854
    %v941 = vmul.f32 %v852, %v934
    %v942 = vmul.f32 %v895, %v854
    %v943 = vmul.f32 %v895, %v934
    %v944 = vpack.c.bf16 %v940, %v940
    %v945 = vpack.c.bf16 %v941, %v941
    %v946 = vpack.c.bf16 %v942, %v942
    %v947 = vpack.c.bf16 %v943, %v943
    %v948 = vld [vmem:[%s5] sm:$0xf]
    %v949 = vld [vmem:[%s5 + $0x4] sm:$0xf]
    %v950 = vld [vmem:[%s5 + $0x8] sm:$0xf]
    %v951 = vld [vmem:[%s5 + $0xc] sm:$0xf]
    %v952 = vld [vmem:[%s5 + $0x10] sm:$0xf]
    %v953 = vld [vmem:[%s5 + $0x14] sm:$0xf]
    %v954 = vld [vmem:[%s5 + $0x18] sm:$0xf]
    %v955 = vld [vmem:[%s5 + $0x1c] sm:$0xf]
    %v956 = vld [vmem:[%s5 + $0x20] sm:$0xf]
    %v957 = vld [vmem:[%s5 + $0x24] sm:$0xf]
    %v958 = vld [vmem:[%s5 + $0x28] sm:$0xf]
    %v959 = vld [vmem:[%s5 + $0x2c] sm:$0xf]
    %v960 = vld [vmem:[%s5 + $0x30] sm:$0xf]
    %v961 = vld [vmem:[%s5 + $0x34] sm:$0xf]
    %v962 = vld [vmem:[%s5 + $0x38] sm:$0xf]
    %v963 = vld [vmem:[%s5 + $0x3c] sm:$0xf]
    %v964 = vld [vmem:[%s5 + $0x40] sm:$0xf]
    %v965 = vld [vmem:[%s5 + $0x44] sm:$0xf]
    %v966 = vld [vmem:[%s5 + $0x48] sm:$0xf]
    %v967 = vld [vmem:[%s5 + $0x4c] sm:$0xf]
    %v968 = vld [vmem:[%s5 + $0x50] sm:$0xf]
    %v969 = vld [vmem:[%s5 + $0x54] sm:$0xf]
    %v970 = vld [vmem:[%s5 + $0x58] sm:$0xf]
    %v971 = vld [vmem:[%s5 + $0x5c] sm:$0xf]
    %v972 = vld [vmem:[%s5 + $0x60] sm:$0xf]
    %v973 = vld [vmem:[%s5 + $0x64] sm:$0xf]
    %v974 = vld [vmem:[%s5 + $0x68] sm:$0xf]
    %v975 = vld [vmem:[%s5 + $0x6c] sm:$0xf]
    %v976 = vld [vmem:[%s5 + $0x70] sm:$0xf]
    %v977 = vld [vmem:[%s5 + $0x74] sm:$0xf]
    %v978 = vld [vmem:[%s5 + $0x78] sm:$0xf]
    %v979 = vld [vmem:[%s5 + $0x7c] sm:$0xf]
    %v980 = vld [vmem:[%s5 + $0x80] sm:$0xf]
    %v981 = vld [vmem:[%s5 + $0x84] sm:$0xf]
    %v982 = vld [vmem:[%s5 + $0x88] sm:$0xf]
    %v983 = vld [vmem:[%s5 + $0x8c] sm:$0xf]
    %v984 = vld [vmem:[%s5 + $0x90] sm:$0xf]
    %v985 = vld [vmem:[%s5 + $0x94] sm:$0xf]
    %v986 = vld [vmem:[%s5 + $0x98] sm:$0xf]
    %v987 = vld [vmem:[%s5 + $0x9c] sm:$0xf]
    %v988 = vld [vmem:[%s5 + $0xa0] sm:$0xf]
    %v989 = vld [vmem:[%s5 + $0xa4] sm:$0xf]
    %v990 = vld [vmem:[%s5 + $0xa8] sm:$0xf]
    %v991 = vld [vmem:[%s5 + $0xac] sm:$0xf]
    %v992 = vld [vmem:[%s5 + $0xb0] sm:$0xf]
    %v993 = vld [vmem:[%s5 + $0xb4] sm:$0xf]
    %v994 = vld [vmem:[%s5 + $0xb8] sm:$0xf]
    %v995 = vld [vmem:[%s5 + $0xbc] sm:$0xf]
    %v996 = vld [vmem:[%s5 + $0xc0] sm:$0xf]
    %v997 = vld [vmem:[%s5 + $0xc4] sm:$0xf]
    %v998 = vld [vmem:[%s5 + $0xc8] sm:$0xf]
    %v999 = vld [vmem:[%s5 + $0xcc] sm:$0xf]
    %v1000 = vld [vmem:[%s5 + $0xd0] sm:$0xf]
    %v1001 = vld [vmem:[%s5 + $0xd4] sm:$0xf]
    %v1002 = vld [vmem:[%s5 + $0xd8] sm:$0xf]
    %v1003 = vld [vmem:[%s5 + $0xdc] sm:$0xf]
    %v1004 = vld [vmem:[%s5 + $0xe0] sm:$0xf]
    %v1005 = vld [vmem:[%s5 + $0xe4] sm:$0xf]
    %v1006 = vld [vmem:[%s5 + $0xe8] sm:$0xf]
    %v1007 = vld [vmem:[%s5 + $0xec] sm:$0xf]
    %v1008 = vld [vmem:[%s5 + $0xf0] sm:$0xf]
    %v1009 = vld [vmem:[%s5 + $0xf4] sm:$0xf]
    %v1010 = vld [vmem:[%s5 + $0xf8] sm:$0xf]
    %v1011 = vld [vmem:[%s5 + $0xfc] sm:$0xf]
    %v1076 = vunpack.c.l.b16 %v948
    %v1077 = vunpack.c.l.b16 %v949
    %v1078 = vunpack.c.l.b16 %v950
    %v1079 = vunpack.c.l.b16 %v951
    %v1080 = vunpack.c.l.b16 %v952
    %v1081 = vunpack.c.l.b16 %v953
    %v1082 = vunpack.c.l.b16 %v954
    %v1083 = vunpack.c.l.b16 %v955
    %v1084 = vunpack.c.l.b16 %v956
    %v1085 = vunpack.c.l.b16 %v957
    %v1086 = vunpack.c.l.b16 %v958
    %v1087 = vunpack.c.l.b16 %v959
    %v1088 = vunpack.c.l.b16 %v960
    %v1089 = vunpack.c.l.b16 %v961
    %v1090 = vunpack.c.l.b16 %v962
    %v1091 = vunpack.c.l.b16 %v963
    %v1092 = vunpack.c.l.b16 %v964
    %v1093 = vunpack.c.l.b16 %v965
    %v1094 = vunpack.c.l.b16 %v966
    %v1095 = vunpack.c.l.b16 %v967
    %v1096 = vunpack.c.l.b16 %v968
    %v1097 = vunpack.c.l.b16 %v969
    %v1098 = vunpack.c.l.b16 %v970
    %v1099 = vunpack.c.l.b16 %v971
    %v1100 = vunpack.c.l.b16 %v972
    %v1101 = vunpack.c.l.b16 %v973
    %v1102 = vunpack.c.l.b16 %v974
    %v1103 = vunpack.c.l.b16 %v975
    %v1104 = vunpack.c.l.b16 %v976
    %v1105 = vunpack.c.l.b16 %v977
    %v1106 = vunpack.c.l.b16 %v978
    %v1107 = vunpack.c.l.b16 %v979
    %v1108 = vunpack.c.l.b16 %v980
    %v1109 = vunpack.c.l.b16 %v981
    %v1110 = vunpack.c.l.b16 %v982
    %v1111 = vunpack.c.l.b16 %v983
    %v1112 = vunpack.c.l.b16 %v984
    %v1113 = vunpack.c.l.b16 %v985
    %v1114 = vunpack.c.l.b16 %v986
    %v1115 = vunpack.c.l.b16 %v987
    %v1116 = vunpack.c.l.b16 %v988
    %v1117 = vunpack.c.l.b16 %v989
    %v1118 = vunpack.c.l.b16 %v990
    %v1119 = vunpack.c.l.b16 %v991
    %v1120 = vunpack.c.l.b16 %v992
    %v1121 = vunpack.c.l.b16 %v993
    %v1122 = vunpack.c.l.b16 %v994
    %v1123 = vunpack.c.l.b16 %v995
    %v1124 = vunpack.c.l.b16 %v996
    %v1125 = vunpack.c.l.b16 %v997
    %v1126 = vunpack.c.l.b16 %v998
    %v1127 = vunpack.c.l.b16 %v999
    %v1128 = vunpack.c.l.b16 %v1000
    %v1129 = vunpack.c.l.b16 %v1001
    %v1130 = vunpack.c.l.b16 %v1002
    %v1131 = vunpack.c.l.b16 %v1003
    %v1132 = vunpack.c.l.b16 %v1004
    %v1133 = vunpack.c.l.b16 %v1005
    %v1134 = vunpack.c.l.b16 %v1006
    %v1135 = vunpack.c.l.b16 %v1007
    %v1136 = vunpack.c.l.b16 %v1008
    %v1137 = vunpack.c.l.b16 %v1009
    %v1138 = vunpack.c.l.b16 %v1010
    %v1139 = vunpack.c.l.b16 %v1011
    %v1140 = vpack.c.b16 %v1077, %v1076
    %v1141 = vpack.c.b16 %v1079, %v1078
    %v1142 = vpack.c.b16 %v1081, %v1080
    %v1143 = vpack.c.b16 %v1083, %v1082
    %v1144 = vpack.c.b16 %v1085, %v1084
    %v1145 = vpack.c.b16 %v1087, %v1086
    %v1146 = vpack.c.b16 %v1089, %v1088
    %v1147 = vpack.c.b16 %v1091, %v1090
    %v1148 = vpack.c.b16 %v1093, %v1092
    %v1149 = vpack.c.b16 %v1095, %v1094
    %v1150 = vpack.c.b16 %v1097, %v1096
    %v1151 = vpack.c.b16 %v1099, %v1098
    %v1152 = vpack.c.b16 %v1101, %v1100
    %v1153 = vpack.c.b16 %v1103, %v1102
    %v1154 = vpack.c.b16 %v1105, %v1104
    %v1155 = vpack.c.b16 %v1107, %v1106
    %v1156 = vpack.c.b16 %v1109, %v1108
    %v1157 = vpack.c.b16 %v1111, %v1110
    %v1158 = vpack.c.b16 %v1113, %v1112
    %v1159 = vpack.c.b16 %v1115, %v1114
    %v1160 = vpack.c.b16 %v1117, %v1116
    %v1161 = vpack.c.b16 %v1119, %v1118
    %v1162 = vpack.c.b16 %v1121, %v1120
    %v1163 = vpack.c.b16 %v1123, %v1122
    %v1164 = vpack.c.b16 %v1125, %v1124
    %v1165 = vpack.c.b16 %v1127, %v1126
    %v1166 = vpack.c.b16 %v1129, %v1128
    %v1167 = vpack.c.b16 %v1131, %v1130
    %v1168 = vpack.c.b16 %v1133, %v1132
    %v1169 = vpack.c.b16 %v1135, %v1134
    %v1170 = vpack.c.b16 %v1137, %v1136
    %v1171 = vpack.c.b16 %v1139, %v1138
    %1204 = vmatprep.subr.bf16.mxu0 0
    %1205 = vmatpush1.bf16.msra.mxu0 %v1140
    %1206 = vmatprep.subr.bf16.mxu0 0
    %1207 = vmatpush1.bf16.msra.mxu0 %v1141
    %1208 = vmatprep.subr.bf16.mxu0 0
    %1209 = vmatpush1.bf16.msra.mxu0 %v1142
    %1210 = vmatprep.subr.bf16.mxu0 0
    %1211 = vmatpush1.bf16.msra.mxu0 %v1143
    %1212 = vmatprep.subr.bf16.mxu0 0
    %1213 = vmatpush1.bf16.msra.mxu0 %v1144
    %1214 = vmatprep.subr.bf16.mxu0 0
    %1215 = vmatpush1.bf16.msra.mxu0 %v1145
    %1216 = vmatprep.subr.bf16.mxu0 0
    %1217 = vmatpush1.bf16.msra.mxu0 %v1146
    %1218 = vmatprep.subr.bf16.mxu0 0
    %1219 = vmatpush1.bf16.msra.mxu0 %v1147
    %1220 = vmatprep.subr.bf16.mxu0 0
    %1221 = vmatpush1.bf16.msra.mxu0 %v1148
    %1222 = vmatprep.subr.bf16.mxu0 0
    %1223 = vmatpush1.bf16.msra.mxu0 %v1149
    %1224 = vmatprep.subr.bf16.mxu0 0
    %1225 = vmatpush1.bf16.msra.mxu0 %v1150
    %1226 = vmatprep.subr.bf16.mxu0 0
    %1227 = vmatpush1.bf16.msra.mxu0 %v1151
    %1228 = vmatprep.subr.bf16.mxu0 0
    %1229 = vmatpush1.bf16.msra.mxu0 %v1152
    %1230 = vmatprep.subr.bf16.mxu0 0
    %1231 = vmatpush1.bf16.msra.mxu0 %v1153
    %1232 = vmatprep.subr.bf16.mxu0 0
    %1233 = vmatpush1.bf16.msra.mxu0 %v1154
    %1234 = vmatprep.subr.bf16.mxu0 0
    %1235 = vmatpush1.bf16.msra.mxu0 %v1155
    %1236 = vmatprep.mubr.bf16.mxu0 %v945
    %1237 = vmatmul.mubr.bf16.gmra.mrb[0].mxu0 %v944
    %v1238 = vpop.f32.mrb[0].mxu0
    %v1239 = vadd.f32 0.0, %v1238
    %v1240 = vpop.f32.mrb[0].mxu0
    %v1241 = vpop.f32.mrb[0].mxu0
    %v1242 = vpop.f32.mrb[0].mxu0
    %1243 = vdwg.mxu0
    %1244 = vmatprep.subr.bf16.mxu0 0
    %1245 = vmatpush1.bf16.msra.mxu0 %v1156
    %1246 = vmatprep.subr.bf16.mxu0 0
    %1247 = vmatpush1.bf16.msra.mxu0 %v1157
    %1248 = vmatprep.subr.bf16.mxu0 0
    %1249 = vmatpush1.bf16.msra.mxu0 %v1158
    %1250 = vmatprep.subr.bf16.mxu0 0
    %1251 = vmatpush1.bf16.msra.mxu0 %v1159
    %1252 = vmatprep.subr.bf16.mxu0 0
    %1253 = vmatpush1.bf16.msra.mxu0 %v1160
    %1254 = vmatprep.subr.bf16.mxu0 0
    %1255 = vmatpush1.bf16.msra.mxu0 %v1161
    %1256 = vmatprep.subr.bf16.mxu0 0
    %1257 = vmatpush1.bf16.msra.mxu0 %v1162
    %1258 = vmatprep.subr.bf16.mxu0 0
    %1259 = vmatpush1.bf16.msra.mxu0 %v1163
    %1260 = vmatprep.subr.bf16.mxu0 0
    %1261 = vmatpush1.bf16.msra.mxu0 %v1164
    %1262 = vmatprep.subr.bf16.mxu0 0
    %1263 = vmatpush1.bf16.msra.mxu0 %v1165
    %1264 = vmatprep.subr.bf16.mxu0 0
    %1265 = vmatpush1.bf16.msra.mxu0 %v1166
    %1266 = vmatprep.subr.bf16.mxu0 0
    %1267 = vmatpush1.bf16.msra.mxu0 %v1167
    %1268 = vmatprep.subr.bf16.mxu0 0
    %1269 = vmatpush1.bf16.msra.mxu0 %v1168
    %1270 = vmatprep.subr.bf16.mxu0 0
    %1271 = vmatpush1.bf16.msra.mxu0 %v1169
    %1272 = vmatprep.subr.bf16.mxu0 0
    %1273 = vmatpush1.bf16.msra.mxu0 %v1170
    %1274 = vmatprep.subr.bf16.mxu0 0
    %1275 = vmatpush1.bf16.msra.mxu0 %v1171
    %1276 = vmatprep.mubr.bf16.mxu0 %v947
    %1277 = vmatmul.mubr.bf16.gmra.mrb[0].mxu0 %v946
    %v1278 = vpop.f32.mrb[0].mxu0
    %v1279 = vadd.f32 %v1239, %v1278
    %v1280 = vpop.f32.mrb[0].mxu0
    %v1281 = vpop.f32.mrb[0].mxu0
    %v1282 = vpop.f32.mrb[0].mxu0
    %1283 = vdwg.mxu0
    %1285 = vrot.lane.b32.xlu0 %v1279, 32
    %v1286 = vpop.permute.xlu0 %1285
    %v1288 = vsub.f32 %v1279, %v1286
    %v1289 = vmin.f32 %v1288, 60.0
    %v1290 = vmul.f32 %v1289, 1.442695
    %v1291 = vpow.pop %v1290
    %v1292 = vadd.f32 %v1291, 1.0
    %v1293 = vrcp.pop %v1292
    %v1294 = vpack.c.bf16 %v1293, %v1293
    %v1295 = vld [vmem:[%s6] sm:$0xff]
    %v1296 = vld [vmem:[%s6 + $0x8] sm:$0xff]
    %v1297 = vld [vmem:[%s6 + $0x10] sm:$0xff]
    %v1298 = vld [vmem:[%s6 + $0x18] sm:$0xff]
    %v1299 = vld [vmem:[%s6 + $0x20] sm:$0xff]
    %v1300 = vld [vmem:[%s6 + $0x28] sm:$0xff]
    %v1301 = vld [vmem:[%s6 + $0x30] sm:$0xff]
    %v1302 = vld [vmem:[%s6 + $0x38] sm:$0xff]
    %1304 = vrot.lane.b32.xlu0 %v1294, 96
    %v1305 = vpop.permute.xlu0 %1304
    %v1314 = vunpack.c.l.b16 %v1295
    %v1315 = vunpack.c.h.b16 %v1295
    %v1316 = vunpack.c.l.b16 %v1296
    %v1317 = vunpack.c.h.b16 %v1296
    %v1318 = vunpack.c.l.b16 %v1297
    %v1319 = vunpack.c.h.b16 %v1297
    %v1320 = vunpack.c.l.b16 %v1298
    %v1321 = vunpack.c.h.b16 %v1298
    %v1322 = vunpack.c.l.b16 %v1299
    %v1323 = vunpack.c.h.b16 %v1299
    %v1324 = vunpack.c.l.b16 %v1300
    %v1325 = vunpack.c.h.b16 %v1300
    %v1326 = vunpack.c.l.b16 %v1301
    %v1327 = vunpack.c.h.b16 %v1301
    %v1328 = vunpack.c.l.b16 %v1302
    %v1329 = vunpack.c.h.b16 %v1302
    %v1330 = vpack.c.b16 %v1318, %v1314
    %v1331 = vpack.c.b16 %v1319, %v1315
    %v1332 = vpack.c.b16 %v1320, %v1316
    %v1333 = vpack.c.b16 %v1321, %v1317
    %v1334 = vpack.c.b16 %v1326, %v1322
    %v1335 = vpack.c.b16 %v1327, %v1323
    %v1336 = vpack.c.b16 %v1328, %v1324
    %v1337 = vpack.c.b16 %v1329, %v1325
    %vm1346 = vcmask 261120
    %v1348 = vsel %vm1346, %v1305, 0
    %1350 = vmatprep.subr.bf16.mxu0 %v1331
    %1351 = vmatpush1.bf16.msra.mxu0 %v1330
    %1352 = vmatprep.subr.bf16.mxu0 %v1335
    %1353 = vmatpush1.bf16.msra.mxu0 %v1334
    %1354 = vmatprep.subr.bf16.mxu0 0
    %1355 = vmatpush1.bf16.msra.mxu0 0
    %1356 = vmatprep.subr.bf16.mxu0 0
    %1357 = vmatpush1.bf16.msra.mxu0 0
    %1358 = vmatprep.subr.bf16.mxu0 0
    %1359 = vmatpush1.bf16.msra.mxu0 0
    %1360 = vmatprep.subr.bf16.mxu0 0
    %1361 = vmatpush1.bf16.msra.mxu0 0
    %1362 = vmatprep.subr.bf16.mxu0 0
    %1363 = vmatpush1.bf16.msra.mxu0 0
    %1364 = vmatprep.subr.bf16.mxu0 0
    %1365 = vmatpush1.bf16.msra.mxu0 0
    %1366 = vmatprep.subr.bf16.mxu0 0
    %1367 = vmatpush1.bf16.msra.mxu0 0
    %1368 = vmatprep.subr.bf16.mxu0 0
    %1369 = vmatpush1.bf16.msra.mxu0 0
    %1370 = vmatprep.subr.bf16.mxu0 0
    %1371 = vmatpush1.bf16.msra.mxu0 0
    %1372 = vmatprep.subr.bf16.mxu0 0
    %1373 = vmatpush1.bf16.msra.mxu0 0
    %1374 = vmatprep.subr.bf16.mxu0 0
    %1375 = vmatpush1.bf16.msra.mxu0 0
    %1376 = vmatprep.subr.bf16.mxu0 0
    %1377 = vmatpush1.bf16.msra.mxu0 0
    %1378 = vmatprep.subr.bf16.mxu0 0
    %1379 = vmatpush1.bf16.msra.mxu0 0
    %1380 = vmatprep.subr.bf16.mxu0 0
    %1381 = vmatpush1.bf16.msra.mxu0 0
    %1382 = vmatprep.mubr.bf16.mxu0 0
    %1383 = vmatmul.mubr.bf16.gmra.mrb[0].mxu0 %v1348
    %v1384 = vpop.f32.mrb[0].mxu0
    %v1385 = vadd.f32 0.0, %v1384
    %v1386 = vpop.f32.mrb[0].mxu0
    %v1387 = vadd.f32 0.0, %v1386
    %v1388 = vpop.f32.mrb[0].mxu0
    %v1389 = vpop.f32.mrb[0].mxu0
    %1390 = vdwg.mxu0
    %1391 = vmatprep.subr.bf16.mxu0 %v1333
    %1392 = vmatpush1.bf16.msra.mxu0 %v1332
    %1393 = vmatprep.subr.bf16.mxu0 %v1337
    %1394 = vmatpush1.bf16.msra.mxu0 %v1336
    %1395 = vmatprep.subr.bf16.mxu0 0
    %1396 = vmatpush1.bf16.msra.mxu0 0
    %1397 = vmatprep.subr.bf16.mxu0 0
    %1398 = vmatpush1.bf16.msra.mxu0 0
    %1399 = vmatprep.subr.bf16.mxu0 0
    %1400 = vmatpush1.bf16.msra.mxu0 0
    %1401 = vmatprep.subr.bf16.mxu0 0
    %1402 = vmatpush1.bf16.msra.mxu0 0
    %1403 = vmatprep.subr.bf16.mxu0 0
    %1404 = vmatpush1.bf16.msra.mxu0 0
    %1405 = vmatprep.subr.bf16.mxu0 0
    %1406 = vmatpush1.bf16.msra.mxu0 0
    %1407 = vmatprep.subr.bf16.mxu0 0
    %1408 = vmatpush1.bf16.msra.mxu0 0
    %1409 = vmatprep.subr.bf16.mxu0 0
    %1410 = vmatpush1.bf16.msra.mxu0 0
    %1411 = vmatprep.subr.bf16.mxu0 0
    %1412 = vmatpush1.bf16.msra.mxu0 0
    %1413 = vmatprep.subr.bf16.mxu0 0
    %1414 = vmatpush1.bf16.msra.mxu0 0
    %1415 = vmatprep.subr.bf16.mxu0 0
    %1416 = vmatpush1.bf16.msra.mxu0 0
    %1417 = vmatprep.subr.bf16.mxu0 0
    %1418 = vmatpush1.bf16.msra.mxu0 0
    %1419 = vmatprep.subr.bf16.mxu0 0
    %1420 = vmatpush1.bf16.msra.mxu0 0
    %1421 = vmatprep.subr.bf16.mxu0 0
    %1422 = vmatpush1.bf16.msra.mxu0 0
    %1423 = vmatprep.mubr.bf16.mxu0 0
    %1424 = vmatmul.mubr.bf16.gmra.mrb[0].mxu0 %v1348
    %v1425 = vpop.f32.mrb[0].mxu0
    %v1426 = vadd.f32 0.0, %v1425
    %v1427 = vpop.f32.mrb[0].mxu0
    %v1428 = vadd.f32 0.0, %v1427
    %v1429 = vpop.f32.mrb[0].mxu0
    %v1430 = vpop.f32.mrb[0].mxu0
    %1431 = vdwg.mxu0
    %v1432 = vmul.f32 %v1385, %v893
    %v1433 = vmul.f32 %v1387, %v936
    %v1434 = vmul.f32 %v1426, %v893
    %v1435 = vmul.f32 %v1428, %v936
    %v1436 = vadd.f32 %v1432, %v1433
    %v1437 = vadd.f32 %v1436, %v1434
    %v1438 = vadd.f32 %v1437, %v1435
    %v1439 = vmul.f32 %v1438, 0.5
    %v1440 = vpack.c.bf16 %v1439, %v1439
    %v1441 = vld [vmem:[%s7] sm:$0xf]
    %v1442 = vld [vmem:[%s7 + $0x4] sm:$0xf]
    %v1443 = vld [vmem:[%s7 + $0x8] sm:$0xf]
    %v1444 = vld [vmem:[%s7 + $0xc] sm:$0xf]
    %v1445 = vld [vmem:[%s7 + $0x10] sm:$0xf]
    %v1446 = vld [vmem:[%s7 + $0x14] sm:$0xf]
    %v1447 = vld [vmem:[%s7 + $0x18] sm:$0xf]
    %v1448 = vld [vmem:[%s7 + $0x1c] sm:$0xf]
    %v1449 = vld [vmem:[%s7 + $0x20] sm:$0xf]
    %v1450 = vld [vmem:[%s7 + $0x24] sm:$0xf]
    %v1451 = vld [vmem:[%s7 + $0x28] sm:$0xf]
    %v1452 = vld [vmem:[%s7 + $0x2c] sm:$0xf]
    %v1453 = vld [vmem:[%s7 + $0x30] sm:$0xf]
    %v1454 = vld [vmem:[%s7 + $0x34] sm:$0xf]
    %v1455 = vld [vmem:[%s7 + $0x38] sm:$0xf]
    %v1456 = vld [vmem:[%s7 + $0x3c] sm:$0xf]
    %v1457 = vld [vmem:[%s8] sm:$0x1]
    %v1459 = vlaneseq
    %v1460 = vshrl.u32 %v1459, 7
    %v1461 = vsub.s32 0, %v1460
    %v1462 = vrot.slane %v1457, %v1461
    %v1480 = vunpack.c.l.b16 %v1441
    %v1481 = vunpack.c.l.b16 %v1442
    %v1482 = vunpack.c.l.b16 %v1443
    %v1483 = vunpack.c.l.b16 %v1444
    %v1484 = vunpack.c.l.b16 %v1445
    %v1485 = vunpack.c.l.b16 %v1446
    %v1486 = vunpack.c.l.b16 %v1447
    %v1487 = vunpack.c.l.b16 %v1448
    %v1488 = vunpack.c.l.b16 %v1449
    %v1489 = vunpack.c.l.b16 %v1450
    %v1490 = vunpack.c.l.b16 %v1451
    %v1491 = vunpack.c.l.b16 %v1452
    %v1492 = vunpack.c.l.b16 %v1453
    %v1493 = vunpack.c.l.b16 %v1454
    %v1494 = vunpack.c.l.b16 %v1455
    %v1495 = vunpack.c.l.b16 %v1456
    %v1496 = vpack.c.b16 %v1481, %v1480
    %v1497 = vpack.c.b16 %v1483, %v1482
    %v1498 = vpack.c.b16 %v1485, %v1484
    %v1499 = vpack.c.b16 %v1487, %v1486
    %v1500 = vpack.c.b16 %v1489, %v1488
    %v1501 = vpack.c.b16 %v1491, %v1490
    %v1502 = vpack.c.b16 %v1493, %v1492
    %v1503 = vpack.c.b16 %v1495, %v1494
    %1512 = vmatprep.subr.bf16.mxu0 0
    %1513 = vmatpush1.bf16.msra.mxu0 %v1496
    %1514 = vmatprep.subr.bf16.mxu0 0
    %1515 = vmatpush1.bf16.msra.mxu0 %v1497
    %1516 = vmatprep.subr.bf16.mxu0 0
    %1517 = vmatpush1.bf16.msra.mxu0 %v1498
    %1518 = vmatprep.subr.bf16.mxu0 0
    %1519 = vmatpush1.bf16.msra.mxu0 %v1499
    %1520 = vmatprep.subr.bf16.mxu0 0
    %1521 = vmatpush1.bf16.msra.mxu0 %v1500
    %1522 = vmatprep.subr.bf16.mxu0 0
    %1523 = vmatpush1.bf16.msra.mxu0 %v1501
    %1524 = vmatprep.subr.bf16.mxu0 0
    %1525 = vmatpush1.bf16.msra.mxu0 %v1502
    %1526 = vmatprep.subr.bf16.mxu0 0
    %1527 = vmatpush1.bf16.msra.mxu0 %v1503
    %1528 = vmatprep.subr.bf16.mxu0 0
    %1529 = vmatpush1.bf16.msra.mxu0 0
    %1530 = vmatprep.subr.bf16.mxu0 0
    %1531 = vmatpush1.bf16.msra.mxu0 0
    %1532 = vmatprep.subr.bf16.mxu0 0
    %1533 = vmatpush1.bf16.msra.mxu0 0
    %1534 = vmatprep.subr.bf16.mxu0 0
    %1535 = vmatpush1.bf16.msra.mxu0 0
    %1536 = vmatprep.subr.bf16.mxu0 0
    %1537 = vmatpush1.bf16.msra.mxu0 0
    %1538 = vmatprep.subr.bf16.mxu0 0
    %1539 = vmatpush1.bf16.msra.mxu0 0
    %1540 = vmatprep.subr.bf16.mxu0 0
    %1541 = vmatpush1.bf16.msra.mxu0 0
    %1542 = vmatprep.subr.bf16.mxu0 0
    %1543 = vmatpush1.bf16.msra.mxu0 0
    %1544 = vmatprep.mubr.bf16.mxu0 0
    %1545 = vmatmul.mubr.bf16.gmra.mrb[0].mxu0 %v1440
    %v1546 = vpop.f32.mrb[0].mxu0
    %v1547 = vadd.f32 %v1462, %v1546
    %v1548 = vpop.f32.mrb[0].mxu0
    %v1549 = vpop.f32.mrb[0].mxu0
    %v1550 = vpop.f32.mrb[0].mxu0
    %1551 = vdwg.mxu0
    %v1552 = vmax.f32 %v1547, 0.0
    %v1553 = vpack.c.bf16 %v1552, %v1552
    %v1554 = vld [vmem:[%s9] sm:$0xf]
    %v1555 = vld [vmem:[%s9 + $0x4] sm:$0xf]
    %v1556 = vld [vmem:[%s9 + $0x8] sm:$0xf]
    %v1557 = vld [vmem:[%s9 + $0xc] sm:$0xf]
    %v1558 = vld [vmem:[%s9 + $0x10] sm:$0xf]
    %v1559 = vld [vmem:[%s9 + $0x14] sm:$0xf]
    %v1560 = vld [vmem:[%s9 + $0x18] sm:$0xf]
    %v1561 = vld [vmem:[%s9 + $0x1c] sm:$0xf]
    %v1562 = vld [vmem:[%s9 + $0x20] sm:$0xf]
    %v1563 = vld [vmem:[%s9 + $0x24] sm:$0xf]
    %v1564 = vld [vmem:[%s9 + $0x28] sm:$0xf]
    %v1565 = vld [vmem:[%s9 + $0x2c] sm:$0xf]
    %v1566 = vld [vmem:[%s9 + $0x30] sm:$0xf]
    %v1567 = vld [vmem:[%s9 + $0x34] sm:$0xf]
    %v1568 = vld [vmem:[%s9 + $0x38] sm:$0xf]
    %v1569 = vld [vmem:[%s9 + $0x3c] sm:$0xf]
    %v1570 = vld [vmem:[%s10] sm:$0x1]
    %v1572 = vlaneseq
    %v1573 = vshrl.u32 %v1572, 7
    %v1574 = vsub.s32 0, %v1573
    %v1575 = vrot.slane %v1570, %v1574
    %v1593 = vunpack.c.l.b16 %v1554
    %v1594 = vunpack.c.l.b16 %v1555
    %v1595 = vunpack.c.l.b16 %v1556
    %v1596 = vunpack.c.l.b16 %v1557
    %v1597 = vunpack.c.l.b16 %v1558
    %v1598 = vunpack.c.l.b16 %v1559
    %v1599 = vunpack.c.l.b16 %v1560
    %v1600 = vunpack.c.l.b16 %v1561
    %v1601 = vunpack.c.l.b16 %v1562
    %v1602 = vunpack.c.l.b16 %v1563
    %v1603 = vunpack.c.l.b16 %v1564
    %v1604 = vunpack.c.l.b16 %v1565
    %v1605 = vunpack.c.l.b16 %v1566
    %v1606 = vunpack.c.l.b16 %v1567
    %v1607 = vunpack.c.l.b16 %v1568
    %v1608 = vunpack.c.l.b16 %v1569
    %v1609 = vpack.c.b16 %v1594, %v1593
    %v1610 = vpack.c.b16 %v1596, %v1595
    %v1611 = vpack.c.b16 %v1598, %v1597
    %v1612 = vpack.c.b16 %v1600, %v1599
    %v1613 = vpack.c.b16 %v1602, %v1601
    %v1614 = vpack.c.b16 %v1604, %v1603
    %v1615 = vpack.c.b16 %v1606, %v1605
    %v1616 = vpack.c.b16 %v1608, %v1607
    %1625 = vmatprep.subr.bf16.mxu0 0
    %1626 = vmatpush1.bf16.msra.mxu0 %v1609
    %1627 = vmatprep.subr.bf16.mxu0 0
    %1628 = vmatpush1.bf16.msra.mxu0 %v1610
    %1629 = vmatprep.subr.bf16.mxu0 0
    %1630 = vmatpush1.bf16.msra.mxu0 %v1611
    %1631 = vmatprep.subr.bf16.mxu0 0
    %1632 = vmatpush1.bf16.msra.mxu0 %v1612
    %1633 = vmatprep.subr.bf16.mxu0 0
    %1634 = vmatpush1.bf16.msra.mxu0 %v1613
    %1635 = vmatprep.subr.bf16.mxu0 0
    %1636 = vmatpush1.bf16.msra.mxu0 %v1614
    %1637 = vmatprep.subr.bf16.mxu0 0
    %1638 = vmatpush1.bf16.msra.mxu0 %v1615
    %1639 = vmatprep.subr.bf16.mxu0 0
    %1640 = vmatpush1.bf16.msra.mxu0 %v1616
    %1641 = vmatprep.subr.bf16.mxu0 0
    %1642 = vmatpush1.bf16.msra.mxu0 0
    %1643 = vmatprep.subr.bf16.mxu0 0
    %1644 = vmatpush1.bf16.msra.mxu0 0
    %1645 = vmatprep.subr.bf16.mxu0 0
    %1646 = vmatpush1.bf16.msra.mxu0 0
    %1647 = vmatprep.subr.bf16.mxu0 0
    %1648 = vmatpush1.bf16.msra.mxu0 0
    %1649 = vmatprep.subr.bf16.mxu0 0
    %1650 = vmatpush1.bf16.msra.mxu0 0
    %1651 = vmatprep.subr.bf16.mxu0 0
    %1652 = vmatpush1.bf16.msra.mxu0 0
    %1653 = vmatprep.subr.bf16.mxu0 0
    %1654 = vmatpush1.bf16.msra.mxu0 0
    %1655 = vmatprep.subr.bf16.mxu0 0
    %1656 = vmatpush1.bf16.msra.mxu0 0
    %1657 = vmatprep.mubr.bf16.mxu0 0
    %1658 = vmatmul.mubr.bf16.gmra.mrb[0].mxu0 %v1553
    %v1659 = vpop.f32.mrb[0].mxu0
    %v1660 = vadd.f32 %v1575, %v1659
    %v1661 = vpop.f32.mrb[0].mxu0
    %v1662 = vpop.f32.mrb[0].mxu0
    %v1663 = vpop.f32.mrb[0].mxu0
    %1664 = vdwg.mxu0
    %vm1665 = vcmask 64512
    %1666 = vst.msk [vmem:[#allocation5] sm:$0xff] %vm1665, %v1660
    // Predicated region
    $region50: #{tpu_custom_call.1} parent=1 // pred_check
      _
    $region51: #{tpu_custom_call.1} parent=1 // pred_check_branch
      %1668 = sbr.rel (0) target = $region53
    $region52: #{tpu_custom_call.1} parent=1 // pred_region
      %s1670 = ssub.s32 128, 128
      %1671 = vsyncadd [#allocation4], %s1670
      %s1673 = sshll.u32 [#allocation5], 4
      %s1674 = int_to_ptr.vmem [resolvable:$true] %s1673
      %1676 = dma.vmem_to_hbm [thread:$0]  %s1674, 128, %s11, [#allocation4]
    $region53: #{tpu_custom_call.1} parent=1 // pred_fallthru
      _
    // Predicated region
    $region54: #{tpu_custom_call.1} parent=1 // pred_check
      _
    $region55: #{tpu_custom_call.1} parent=1 // pred_check_branch
      %1678 = sbr.rel (0) target = $region57
    $region56: #{tpu_custom_call.1} parent=1 // pred_region
      %1679 = dma.done [#allocation4], 128
    $region57: #{tpu_custom_call.1} parent=1 // pred_fallthru
      _
    %1680 = vsyncpa [#allocation3], 1
    %1681 = vsyncpa [#allocation4], 1

</llo_original>
